<compile_context>
chip_gen: v5e
topology: v5e:2x2
jax: 0.10.0
libtpu: 0.0.40
codegen_flags: <defaults>
</compile_context>

<pallas_src>
import functools

import jax
import jax.numpy as jnp
from jax.experimental import pallas as pl
from jax.experimental.pallas import tpu as pltpu

HIDDEN_DIM = 50  # fixed by the module (__init__: self.hidden_dim = 50)


def _softplus(x):
    # Numerically stable softplus(x) = max(x, 0) + log1p(exp(-|x|)).
    return jnp.maximum(x, 0.0) + jnp.log1p(jnp.exp(-jnp.abs(x)))


def _latent_kernel(num_time, num_reads, num_assemblages,
                   reads_ref, w1_ref, b1_ref, w2_ref, b2_ref,
                   whead_ref, bhead_ref, eps_ref, cd_ref, out_ref):
    """One grid step == one block of SB subjects (their t=0 reads)."""
    L, R = num_assemblages, num_reads
    mm = w1_ref.dtype  # matmul operand dtype (f32, or bf16 on v6e/v7x)

    reads = reads_ref[...]                                               # (SB*R, O)
    h = _softplus(jnp.dot(reads, w1_ref[...],
                          preferred_element_type=jnp.float32) + b1_ref[...])
    h = _softplus(jnp.dot(h.astype(mm), w2_ref[...],
                          preferred_element_type=jnp.float32) + b2_ref[...])   # (SB*R, H) f32

    # Reduce over reads BEFORE the head projection: per-subject mean of h.
    sbr, H = h.shape
    sb = sbr // R
    enc = jnp.sum(h.reshape(sb, R, H), axis=1) * (1.0 / R)               # (SB, H)

    # Single fused head matmul against [Wmu | Wvar]  -> (SB, 2L).
    head = jnp.dot(enc.astype(mm), whead_ref[...],
                   preferred_element_type=jnp.float32) + bhead_ref[...]

    # Transpose once (XLU) so everything downstream is lane-dense in subjects.
    head_t = jnp.transpose(head)                                         # (2L, SB)
    mu = head_t[:L, :]                                                   # (L, SB)
    logvar = head_t[L:, :]                                               # (L, SB)

    std = jnp.exp(0.5 * logvar)        # one EUP exp; var = std*std on the VPU
    var = std * std
    x0 = mu + std * eps_ref[...]                                         # (L, SB) t=0 sample

    out_ref[0, :, :] = x0
    if num_time == 2:
        # x_latent[:, 1, :] = x_latent[:, 0, :] + c_indicators[:, 0, None] * delta[:, 0, None]
        out_ref[1, :, :] = x0 + cd_ref[...]                              # cd (L,1) lane-broadcast
    # Packed lane-dense KL row: 0.5*(var + mu^2 - 1 - log var); log(var) == logvar.
    out_ref[num_time, :, :] = 0.5 * (var + mu * mu - 1.0 - logvar)


@functools.partial(jax.jit, static_argnames=("subject_block", "use_bf16_matmul"))
def latent_mixture_forward(reads, eps, c_indicators, delta,
                           w1, b1, w2, b2, wmu, bmu, wvar, bvar,
                           subject_block=None, use_bf16_matmul=False):
    """JAX/Pallas port of LatentTimeSeriesMixtureWeights.forward (var_process=None).

    reads: (T, S, R, O) dense "normed_data"; eps: (L, T, S) reparameterization noise.
    Returns (x_latent of shape (L, T, S), KL_latent scalar).
    """
    T, S, R, O = reads.shape
    H, L = wmu.shape
    if T not in (1, 2):
        raise NotImplementedError("var_process / compute_KL path not implemented")
    f32 = jnp.float32

    # ---- subject tiling: batch SB subjects per grid step -------------------
    if subject_block is None:
        sb = max(1, min(S, pl.cdiv(512, R)))   # target ~512 MXU rows per step
        if sb >= S and S > 1:
            sb = pl.cdiv(S, 2)                 # keep grid length >= 2 (v7x: 2 TCs)
        subject_block = sb
    SB = int(subject_block)
    NB = pl.cdiv(S, SB)
    S_pad = NB * SB

    # Only t=0 data reaches the returned values on this branch (for T==2 the
    # t=1 latent is deterministically x0 + c*delta and KL only uses t=0).
    reads0 = reads[0].astype(f32)                               # (S, R, O)
    eps0 = eps[:, 0, :].astype(f32)                             # (L, S)
    if S_pad != S:
        reads0 = jnp.pad(reads0, ((0, S_pad - S), (0, 0), (0, 0)))
        eps0 = jnp.pad(eps0, ((0, 0), (0, S_pad - S)))
    reads_blk = reads0.reshape(NB, SB * R, O)                   # M = SB*R per step
    eps_blk = jnp.transpose(eps0.reshape(L, NB, SB), (1, 0, 2))  # (NB, L, SB) lane-dense

    if T == 2:
        cd = (c_indicators[:, 0] * delta[:, 0]).astype(f32).reshape(L, 1)
    else:
        cd = jnp.zeros((L, 1), f32)

    # Fused head weights: [Wmu | Wvar] (H, 2L), [bmu | bvar] (1, 2L).
    whead = jnp.concatenate([wmu, wvar], axis=1).astype(f32)
    bhead = jnp.concatenate([bmu.reshape(1, L), bvar.reshape(1, L)], axis=1).astype(f32)
    b1_ = b1.astype(f32).reshape(1, H)
    b2_ = b2.astype(f32).reshape(1, H)

    # Matmul operands: f32 by default; bf16 halves operand DMA/VMEM and runs
    # the v6e/v7x MXU natively (accumulation stays f32; VPU/EUP math stays f32).
    mm = jnp.bfloat16 if use_bf16_matmul else f32
    reads_blk = reads_blk.astype(mm)
    w1_, w2_, whead_ = w1.astype(mm), w2.astype(mm), whead.astype(mm)

    # ---- pallas_call bookkeeping -------------------------------------------
    mm_itemsize = 2 if use_bf16_matmul else 4
    est_vmem = (2 * (SB * R * O * mm_itemsize + L * SB * 4 + (T + 1) * L * SB * 4)   # pipelined blocks
                + 2 * ((O * H + H * H + 2 * H * L) * mm_itemsize + (2 * H + 3 * L) * 4)  # resident weights
                + 8 * SB * R * H * 4)                                                  # h1/h2 + temps
    vmem_limit = int(min(max(2 * est_vmem, 32 * 1024 * 1024), 64 * 1024 * 1024))

    cost = pl.CostEstimate(
        flops=2 * S_pad * R * (O * H + H * H) + 2 * S_pad * H * 2 * L,
        transcendentals=4 * S_pad * R * H + S_pad * L,
        bytes_accessed=(S_pad * R * O * mm_itemsize
                        + (L * S_pad + (T + 1) * L * S_pad) * 4
                        + (O * H + H * H + 2 * H * L) * mm_itemsize))

    const2 = lambda i: (0, 0)
    out = pl.pallas_call(
        functools.partial(_latent_kernel, T, R, L),
        out_shape=jax.ShapeDtypeStruct((NB, T + 1, L, SB), f32),
        grid=(NB,),
        in_specs=[
            pl.BlockSpec((None, SB * R, O), lambda i: (i, 0, 0)),   # reads of subject block i
            pl.BlockSpec((O, H), const2),                           # q_encode[0] weight
            pl.BlockSpec((1, H), const2),                           # q_encode[0] bias
            pl.BlockSpec((H, H), const2),                           # q_encode[2] weight
            pl.BlockSpec((1, H), const2),                           # q_encode[2] bias
            pl.BlockSpec((H, 2 * L), const2),                       # [Wmu | Wvar]
            pl.BlockSpec((1, 2 * L), const2),                       # [bmu | bvar]
            pl.BlockSpec((None, L, SB), lambda i: (i, 0, 0)),       # eps[:, 0, block i] (lane-dense)
            pl.BlockSpec((L, 1), const2),                           # c_indicators[:,0] * delta[:,0]
        ],
        out_specs=pl.BlockSpec((None, T + 1, L, SB), lambda i: (i, 0, 0, 0)),
        compiler_params=pltpu.CompilerParams(
            dimension_semantics=("parallel",),
            vmem_limit_bytes=vmem_limit),
        cost_estimate=cost,
    )(reads_blk, w1_, b1_, w2_, b2_, whead_, bhead, eps_blk, cd)

    # out[i, :T, :, :] = x_latent (L on sublanes, subjects on lanes);
    # out[i,  T, :, :] = per-(assemblage, subject) KL contribution.
    x_latent = jnp.transpose(out[:, :T], (2, 1, 0, 3)).reshape(L, T, S_pad)[:, :, :S]
    kl = jnp.sum(jnp.transpose(out[:, T], (1, 0, 2)).reshape(L, S_pad)[:, :S])
    return x_latent, kl


def reference_forward(reads, eps, c_indicators, delta,
                      w1, b1, w2, b2, wmu, bmu, wvar, bvar):
    """Pure-JAX transcription of the torch forward (var_process=None path)."""
    T = reads.shape[0]
    h = jax.nn.softplus(reads @ w1 + b1)
    h = jax.nn.softplus(h @ w2 + b2)
    enc = h.mean(axis=2)                                           # (T, S, H)
    mu = jnp.transpose(enc @ wmu + bmu, (2, 0, 1))                 # (L, T, S)
    var = jnp.exp(jnp.transpose(enc @ wvar + bvar, (2, 0, 1)))
    x = mu + jnp.sqrt(var) * eps
    if T == 2:
        x = x.at[:, 1, :].set(x[:, 0, :] +
                              (c_indicators[:, 0] * delta[:, 0])[:, None])
    kl = 0.5 * jnp.sum(var[:, 0, :] + mu[:, 0, :] ** 2 - 1.0 - jnp.log(var[:, 0, :]))
    return x, kl


if __name__ == "__main__":
    key = jax.random.PRNGKey(0)
    # Small shapes consistent with the module (R kept a multiple of 8 so the
    # in-kernel (SB*R, H) -> (SB, R, H) split is sublane-tile aligned).
    L, O, T, S, R, H = 8, 16, 2, 16, 16, HIDDEN_DIM
    ks = jax.random.split(key, 12)

    reads = jax.random.uniform(ks[0], (T, S, R, O), jnp.float32)
    reads = reads / jnp.sum(reads, axis=-1, keepdims=True)          # "normed_data"
    eps = jax.random.normal(ks[1], (L, T, S), jnp.float32)          # sample_eps()
    c_indicators = jax.random.bernoulli(ks[2], 0.5, (L, 1)).astype(jnp.float32)
    delta = jax.random.normal(ks[3], (L, 1), jnp.float32)

    def lin(kw, kb, fan_in, fan_out):  # ~ torch.nn.Linear default init
        bound = 1.0 / float(fan_in) ** 0.5
        w = jax.random.uniform(kw, (fan_in, fan_out), jnp.float32, -bound, bound)
        b = jax.random.uniform(kb, (1, fan_out), jnp.float32, -bound, bound)
        return w, b

    w1, b1 = lin(ks[4], ks[5], O, H)
    w2, b2 = lin(ks[6], ks[7], H, H)
    wmu, bmu = lin(ks[8], ks[9], H, L)
    wvar, bvar = lin(ks[10], ks[11], H, L)

    x_latent, kl = latent_mixture_forward(reads, eps, c_indicators, delta,
                                          w1, b1, w2, b2, wmu, bmu, wvar, bvar)
    x_latent, kl = jax.block_until_ready((x_latent, kl))

    with jax.default_matmul_precision("float32"):
        x_ref, kl_ref = reference_forward(reads, eps, c_indicators, delta,
                                          w1, b1, w2, b2, wmu, bmu, wvar, bvar)

    assert x_latent.shape == (L, T, S)
    assert bool(jnp.all(jnp.isfinite(x_latent))) and bool(jnp.isfinite(kl))
    assert bool(jnp.allclose(x_latent, x_ref, rtol=5e-3, atol=5e-3)), \
        float(jnp.max(jnp.abs(x_latent - x_ref)))
    assert bool(jnp.allclose(kl, kl_ref, rtol=5e-3, atol=5e-3)), (float(kl), float(kl_ref))

    print("KERNEL_OK")
</pallas_src>

<mosaic_0001>
module attributes {stable_mosaic.version = 11 : i64} {
  func.func @_latent_kernel(%arg0: i32, %arg1: memref<1x128x16xf32, #tpu.memory_space<vmem>>, %arg2: memref<16x50xf32, #tpu.memory_space<vmem>>, %arg3: memref<1x50xf32, #tpu.memory_space<vmem>>, %arg4: memref<50x50xf32, #tpu.memory_space<vmem>>, %arg5: memref<1x50xf32, #tpu.memory_space<vmem>>, %arg6: memref<50x16xf32, #tpu.memory_space<vmem>>, %arg7: memref<1x16xf32, #tpu.memory_space<vmem>>, %arg8: memref<1x8x8xf32, #tpu.memory_space<vmem>>, %arg9: memref<8x1xf32, #tpu.memory_space<vmem>>, %arg10: memref<1x3x8x8xf32, #tpu.memory_space<vmem>>) attributes {dimension_semantics = [#tpu.dimension_semantics<parallel>], iteration_bounds = array<i64: 2>, scalar_prefetch = 0 : i64, scratch_operands = 0 : i64, tpu.core_type = #tpu.core_type<tc>, window_params = [{transform_indices = @transform_0, window_bounds = array<i64: 1, 128, 16>}, {pipeline_mode = #tpu.pipeline_mode<synchronous>, transform_indices = @transform_1, window_bounds = array<i64: 16, 50>}, {pipeline_mode = #tpu.pipeline_mode<synchronous>, transform_indices = @transform_2, window_bounds = array<i64: 1, 50>}, {pipeline_mode = #tpu.pipeline_mode<synchronous>, transform_indices = @transform_3, window_bounds = array<i64: 50, 50>}, {pipeline_mode = #tpu.pipeline_mode<synchronous>, transform_indices = @transform_4, window_bounds = array<i64: 1, 50>}, {pipeline_mode = #tpu.pipeline_mode<synchronous>, transform_indices = @transform_5, window_bounds = array<i64: 50, 16>}, {pipeline_mode = #tpu.pipeline_mode<synchronous>, transform_indices = @transform_6, window_bounds = array<i64: 1, 16>}, {transform_indices = @transform_7, window_bounds = array<i64: 1, 8, 8>}, {pipeline_mode = #tpu.pipeline_mode<synchronous>, transform_indices = @transform_8, window_bounds = array<i64: 8, 1>}, {transform_indices = @transform_9, window_bounds = array<i64: 1, 3, 8, 8>}]} {
    %c0 = arith.constant 0 : index
    %c0_0 = arith.constant 0 : index
    %c0_1 = arith.constant 0 : index
    %0 = vector.load %arg1[%c0, %c0_0, %c0_1] : memref<1x128x16xf32, #tpu.memory_space<vmem>>, vector<1x128x16xf32>
    %1 = vector.shape_cast %0 : vector<1x128x16xf32> to vector<128x16xf32>
    %c0_2 = arith.constant 0 : index
    %c0_3 = arith.constant 0 : index
    %2 = vector.load %arg2[%c0_2, %c0_3] : memref<16x50xf32, #tpu.memory_space<vmem>>, vector<16x50xf32>
    %cst = arith.constant dense<0.000000e+00> : vector<128x50xf32>
    %3 = tpu.matmul %1, %2, %cst {dimension_numbers = #tpu.dot_dimension_numbers<[1], [0], [0], [1], [0, 0, 1, 1], [], []>} : vector<128x16xf32>, vector<16x50xf32>, vector<128x50xf32> -> vector<128x50xf32>
    %c0_4 = arith.constant 0 : index
    %c0_5 = arith.constant 0 : index
    %4 = vector.load %arg3[%c0_4, %c0_5] : memref<1x50xf32, #tpu.memory_space<vmem>>, vector<1x50xf32>
    %5 = vector.broadcast %4 : vector<1x50xf32> to vector<128x50xf32>
    %6 = arith.addf %3, %5 : vector<128x50xf32>
    %cst_6 = arith.constant 0.000000e+00 : f32
    %7 = vector.broadcast %cst_6 : f32 to vector<128x50xf32>
    %8 = arith.maximumf %6, %7 : vector<128x50xf32>
    %9 = math.absf %6 : vector<128x50xf32>
    %cst_7 = arith.constant 0.000000e+00 : f32
    %10 = vector.broadcast %cst_7 : f32 to vector<128x50xf32>
    %11 = arith.subf %10, %9 : vector<128x50xf32>
    %12 = math.exp %11 : vector<128x50xf32>
    %13 = math.log1p %12 : vector<128x50xf32>
    %14 = arith.addf %8, %13 : vector<128x50xf32>
    %c0_8 = arith.constant 0 : index
    %c0_9 = arith.constant 0 : index
    %15 = vector.load %arg4[%c0_8, %c0_9] : memref<50x50xf32, #tpu.memory_space<vmem>>, vector<50x50xf32>
    %cst_10 = arith.constant dense<0.000000e+00> : vector<128x50xf32>
    %16 = tpu.matmul %14, %15, %cst_10 {dimension_numbers = #tpu.dot_dimension_numbers<[1], [0], [0], [1], [0, 0, 1, 1], [], []>} : vector<128x50xf32>, vector<50x50xf32>, vector<128x50xf32> -> vector<128x50xf32>
    %c0_11 = arith.constant 0 : index
    %c0_12 = arith.constant 0 : index
    %17 = vector.load %arg5[%c0_11, %c0_12] : memref<1x50xf32, #tpu.memory_space<vmem>>, vector<1x50xf32>
    %18 = vector.broadcast %17 : vector<1x50xf32> to vector<128x50xf32>
    %19 = arith.addf %16, %18 : vector<128x50xf32>
    %cst_13 = arith.constant 0.000000e+00 : f32
    %20 = vector.broadcast %cst_13 : f32 to vector<128x50xf32>
    %21 = arith.maximumf %19, %20 : vector<128x50xf32>
    %22 = math.absf %19 : vector<128x50xf32>
    %cst_14 = arith.constant 0.000000e+00 : f32
    %23 = vector.broadcast %cst_14 : f32 to vector<128x50xf32>
    %24 = arith.subf %23, %22 : vector<128x50xf32>
    %25 = math.exp %24 : vector<128x50xf32>
    %26 = math.log1p %25 : vector<128x50xf32>
    %27 = arith.addf %21, %26 : vector<128x50xf32>
    %28 = vector.shape_cast %27 : vector<128x50xf32> to vector<8x16x50xf32>
    %cst_15 = arith.constant dense<0.000000e+00> : vector<8x50xf32>
    %29 = vector.multi_reduction <add>, %28, %cst_15 [1] : vector<8x16x50xf32> to vector<8x50xf32>
    %cst_16 = arith.constant 6.250000e-02 : f32
    %30 = vector.broadcast %cst_16 : f32 to vector<8x50xf32>
    %31 = arith.mulf %29, %30 : vector<8x50xf32>
    %c0_17 = arith.constant 0 : index
    %c0_18 = arith.constant 0 : index
    %32 = vector.load %arg6[%c0_17, %c0_18] : memref<50x16xf32, #tpu.memory_space<vmem>>, vector<50x16xf32>
    %cst_19 = arith.constant dense<0.000000e+00> : vector<8x16xf32>
    %33 = tpu.matmul %31, %32, %cst_19 {dimension_numbers = #tpu.dot_dimension_numbers<[1], [0], [0], [1], [0, 0, 1, 1], [], []>} : vector<8x50xf32>, vector<50x16xf32>, vector<8x16xf32> -> vector<8x16xf32>
    %c0_20 = arith.constant 0 : index
    %c0_21 = arith.constant 0 : index
    %34 = vector.load %arg7[%c0_20, %c0_21] : memref<1x16xf32, #tpu.memory_space<vmem>>, vector<1x16xf32>
    %35 = vector.broadcast %34 : vector<1x16xf32> to vector<8x16xf32>
    %36 = arith.addf %33, %35 : vector<8x16xf32>
    %37 = tpu.transpose %36, [1, 0] : vector<8x16xf32> -> vector<16x8xf32>
    %38 = vector.extract_strided_slice %37 {offsets = [0, 0], sizes = [8, 8], strides = [1, 1]} : vector<16x8xf32> to vector<8x8xf32>
    %39 = vector.extract_strided_slice %37 {offsets = [8, 0], sizes = [8, 8], strides = [1, 1]} : vector<16x8xf32> to vector<8x8xf32>
    %cst_22 = arith.constant 5.000000e-01 : f32
    %40 = vector.broadcast %cst_22 : f32 to vector<8x8xf32>
    %41 = arith.mulf %40, %39 : vector<8x8xf32>
    %42 = math.exp %41 : vector<8x8xf32>
    %43 = arith.mulf %42, %42 : vector<8x8xf32>
    %c0_23 = arith.constant 0 : index
    %c0_24 = arith.constant 0 : index
    %c0_25 = arith.constant 0 : index
    %44 = vector.load %arg8[%c0_23, %c0_24, %c0_25] : memref<1x8x8xf32, #tpu.memory_space<vmem>>, vector<1x8x8xf32>
    %45 = vector.shape_cast %44 : vector<1x8x8xf32> to vector<8x8xf32>
    %46 = arith.mulf %42, %45 : vector<8x8xf32>
    %47 = arith.addf %38, %46 : vector<8x8xf32>
    %c0_26 = arith.constant 0 : index
    %c0_27 = arith.constant 0 : index
    %c0_28 = arith.constant 0 : index
    %c0_29 = arith.constant 0 : index
    %48 = vector.load %arg10[%c0_26, %c0_27, %c0_28, %c0_29] : memref<1x3x8x8xf32, #tpu.memory_space<vmem>>, vector<1x1x8x8xf32>
    %49 = vector.shape_cast %48 : vector<1x1x8x8xf32> to vector<8x8xf32>
    %50 = vector.shape_cast %47 : vector<8x8xf32> to vector<1x1x8x8xf32>
    tpu.vector_store %arg10[%c0_26, %c0_27, %c0_28, %c0_29], %50 {strides = array<i32>} : memref<1x3x8x8xf32, #tpu.memory_space<vmem>>, vector<1x1x8x8xf32>,
    %c0_30 = arith.constant 0 : index
    %c0_31 = arith.constant 0 : index
    %51 = vector.load %arg9[%c0_30, %c0_31] : memref<8x1xf32, #tpu.memory_space<vmem>>, vector<8x1xf32>
    %52 = vector.broadcast %51 : vector<8x1xf32> to vector<8x8xf32>
    %53 = arith.addf %47, %52 : vector<8x8xf32>
    %c0_32 = arith.constant 0 : index
    %c1 = arith.constant 1 : index
    %c0_33 = arith.constant 0 : index
    %c0_34 = arith.constant 0 : index
    %54 = vector.load %arg10[%c0_32, %c1, %c0_33, %c0_34] : memref<1x3x8x8xf32, #tpu.memory_space<vmem>>, vector<1x1x8x8xf32>
    %55 = vector.shape_cast %54 : vector<1x1x8x8xf32> to vector<8x8xf32>
    %56 = vector.shape_cast %53 : vector<8x8xf32> to vector<1x1x8x8xf32>
    tpu.vector_store %arg10[%c0_32, %c1, %c0_33, %c0_34], %56 {strides = array<i32>} : memref<1x3x8x8xf32, #tpu.memory_space<vmem>>, vector<1x1x8x8xf32>,
    %57 = arith.mulf %38, %38 : vector<8x8xf32>
    %58 = arith.addf %43, %57 : vector<8x8xf32>
    %cst_35 = arith.constant 1.000000e+00 : f32
    %59 = vector.broadcast %cst_35 : f32 to vector<8x8xf32>
    %60 = arith.subf %58, %59 : vector<8x8xf32>
    %61 = arith.subf %60, %39 : vector<8x8xf32>
    %cst_36 = arith.constant 5.000000e-01 : f32
    %62 = vector.broadcast %cst_36 : f32 to vector<8x8xf32>
    %63 = arith.mulf %62, %61 : vector<8x8xf32>
    %c0_37 = arith.constant 0 : index
    %c2 = arith.constant 2 : index
    %c0_38 = arith.constant 0 : index
    %c0_39 = arith.constant 0 : index
    %64 = vector.load %arg10[%c0_37, %c2, %c0_38, %c0_39] : memref<1x3x8x8xf32, #tpu.memory_space<vmem>>, vector<1x1x8x8xf32>
    %65 = vector.shape_cast %64 : vector<1x1x8x8xf32> to vector<8x8xf32>
    %66 = vector.shape_cast %63 : vector<8x8xf32> to vector<1x1x8x8xf32>
    tpu.vector_store %arg10[%c0_37, %c2, %c0_38, %c0_39], %66 {strides = array<i32>} : memref<1x3x8x8xf32, #tpu.memory_space<vmem>>, vector<1x1x8x8xf32>,
    return
  }
  func.func @transform_0(%arg0: i32) -> (i32, i32, i32) {
    %c0_i32 = arith.constant 0 : i32
    %c0_i32_0 = arith.constant 0 : i32
    %c0_i32_1 = arith.constant 0 : i32
    return %arg0, %c0_i32, %c0_i32_0 : i32, i32, i32
  }
  func.func @transform_1(%arg0: i32) -> (i32, i32) {
    %c0_i32 = arith.constant 0 : i32
    %c0_i32_0 = arith.constant 0 : i32
    %c0_i32_1 = arith.constant 0 : i32
    return %c0_i32, %c0_i32_0 : i32, i32
  }
  func.func @transform_2(%arg0: i32) -> (i32, i32) {
    %c0_i32 = arith.constant 0 : i32
    %c0_i32_0 = arith.constant 0 : i32
    %c0_i32_1 = arith.constant 0 : i32
    return %c0_i32, %c0_i32_0 : i32, i32
  }
  func.func @transform_3(%arg0: i32) -> (i32, i32) {
    %c0_i32 = arith.constant 0 : i32
    %c0_i32_0 = arith.constant 0 : i32
    %c0_i32_1 = arith.constant 0 : i32
    return %c0_i32, %c0_i32_0 : i32, i32
  }
  func.func @transform_4(%arg0: i32) -> (i32, i32) {
    %c0_i32 = arith.constant 0 : i32
    %c0_i32_0 = arith.constant 0 : i32
    %c0_i32_1 = arith.constant 0 : i32
    return %c0_i32, %c0_i32_0 : i32, i32
  }
  func.func @transform_5(%arg0: i32) -> (i32, i32) {
    %c0_i32 = arith.constant 0 : i32
    %c0_i32_0 = arith.constant 0 : i32
    %c0_i32_1 = arith.constant 0 : i32
    return %c0_i32, %c0_i32_0 : i32, i32
  }
  func.func @transform_6(%arg0: i32) -> (i32, i32) {
    %c0_i32 = arith.constant 0 : i32
    %c0_i32_0 = arith.constant 0 : i32
    %c0_i32_1 = arith.constant 0 : i32
    return %c0_i32, %c0_i32_0 : i32, i32
  }
  func.func @transform_7(%arg0: i32) -> (i32, i32, i32) {
    %c0_i32 = arith.constant 0 : i32
    %c0_i32_0 = arith.constant 0 : i32
    %c0_i32_1 = arith.constant 0 : i32
    return %arg0, %c0_i32, %c0_i32_0 : i32, i32, i32
  }
  func.func @transform_8(%arg0: i32) -> (i32, i32) {
    %c0_i32 = arith.constant 0 : i32
    %c0_i32_0 = arith.constant 0 : i32
    %c0_i32_1 = arith.constant 0 : i32
    return %c0_i32, %c0_i32_0 : i32, i32
  }
  func.func @transform_9(%arg0: i32) -> (i32, i32, i32, i32) {
    %c0_i32 = arith.constant 0 : i32
    %c0_i32_0 = arith.constant 0 : i32
    %c0_i32_1 = arith.constant 0 : i32
    %c0_i32_2 = arith.constant 0 : i32
    return %arg0, %c0_i32, %c0_i32_0, %c0_i32_1 : i32, i32, i32, i32
  }
}

</mosaic_0001>

<llo_original>
// kernel: squeeze.6
$region0: #{squeeze.6}
  %s0 = inlined_call_operand.vmem [shape: f32[8,16], index: 0, kind: input, shape index: {}]
  %s1 = inlined_call_operand.vmem [shape: f32[8,2,8], index: 1, kind: output, shape index: {}]
  $region1: #{squeeze.6} parent=0
    #allocation0 [shape = 'u8[32768]{0}', space=vmem, size = 0x8000, scoped, tag = 'scoped mem for output reshape']
    %v2 = vld [vmem:[%s0] sm:$0xff]
    %vm3 = vcmask 64512
    %4 = vst.msk [vmem:[#allocation0] ss:$8 sm:$0xf] %vm3, %v2
    %5 = vst.msk [vmem:[#allocation0] ss:$8 sm:$0xf0] %vm3, %v2
    %v6 = vld [vmem:[%s0] sm:$0xff]
    %7 = vrot.lane.b32.xlu0 %v6, 120
    %v8 = vpop.permute.xlu0 %7
    %vm9 = vcmask 64512
    %s10 = scalar_lea.vmem [#allocation0], 1
    %11 = vst.msk [vmem:[%s10] ss:$8 sm:$0xf] %vm9, %v8
    %s12 = scalar_lea.vmem [#allocation0], 1
    %13 = vst.msk [vmem:[%s12] ss:$8 sm:$0xf0] %vm9, %v8
    %s15 = ssub.s32 4, 1
    %v16 = vld [vmem:[#allocation0] sm:%s15]
    %s18 = ssub.s32 4, 1
    %19 = vst [vmem:[%s1] sm:%s18] %v16
    %s20 = scalar_lea.vmem [#allocation0], 8
    %v21 = vld [vmem:[%s20] sm:%s15]
    %s23 = ssub.s32 4, 1
    %s24 = scalar_lea.vmem %s1, 2
    %25 = vst [vmem:[%s24] sm:%s23] %v21
    %s26 = scalar_lea.vmem [#allocation0], 16
    %v27 = vld [vmem:[%s26] sm:%s15]
    %s29 = ssub.s32 4, 1
    %s30 = scalar_lea.vmem %s1, 4
    %31 = vst [vmem:[%s30] sm:%s29] %v27
    %s32 = scalar_lea.vmem [#allocation0], 24
    %v33 = vld [vmem:[%s32] sm:%s15]
    %s35 = ssub.s32 4, 1
    %s36 = scalar_lea.vmem %s1, 6
    %37 = vst [vmem:[%s36] sm:%s35] %v33
    %s38 = scalar_lea.vmem [#allocation0], 32
    %v39 = vld [vmem:[%s38] sm:%s15]
    %s41 = ssub.s32 4, 1
    %s42 = scalar_lea.vmem %s1, 8
    %43 = vst [vmem:[%s42] sm:%s41] %v39
    %s44 = scalar_lea.vmem [#allocation0], 40
    %v45 = vld [vmem:[%s44] sm:%s15]
    %s47 = ssub.s32 4, 1
    %s48 = scalar_lea.vmem %s1, 10
    %49 = vst [vmem:[%s48] sm:%s47] %v45
    %s50 = scalar_lea.vmem [#allocation0], 48
    %v51 = vld [vmem:[%s50] sm:%s15]
    %s53 = ssub.s32 4, 1
    %s54 = scalar_lea.vmem %s1, 12
    %55 = vst [vmem:[%s54] sm:%s53] %v51
    %s56 = scalar_lea.vmem [#allocation0], 56
    %v57 = vld [vmem:[%s56] sm:%s15]
    %s59 = ssub.s32 4, 1
    %s60 = scalar_lea.vmem %s1, 14
    %61 = vst [vmem:[%s60] sm:%s59] %v57

// kernel: mul.0
$region0: #{mul.0}
  #allocation0 [shape = 's32[1]{0}', space=sflag, size = 0x4, scoped, tag = 'scoped memory for mul.0']
  %s0 = inlined_call_operand.vmem [shape: f32[8,1], index: 0, kind: input, shape index: {}]
  %s1 = inlined_call_operand.vmem [shape: f32[8,1], index: 1, kind: input, shape index: {}]
  %s2 = inlined_call_operand.vmem [shape: f32[8,1], index: 2, kind: output, shape index: {}]
  %v3 = vld [vmem:[%s0] sm:$0xff]
  %v4 = vld [vmem:[%s1] sm:$0xff]
  %5 = xla_tuple %v3, %v4
  %6 = xla_tuple %5
  %v7 = vmul.f32 %v3, %v4
  %8 = xla_tuple %v7
  %9 = vst [vmem:[%s2] sm:$0xff] %v7

// kernel: latent_mixture_forward.1
$region0: #{latent_mixture_forward.1}
  #allocation0 [shape = 'u32[]', space=smem, size = 0x4, offset = 0x4, fixed_abs, tag = 'smem constant byte address 0x4 - core index']
  #allocation1 [shape = 'u32[72,128]{1,0:T(1,128)}', space=vmem, size = 0x9000, scoped, tag = 'internal scratch']
  %s0 = inlined_call_operand.vmem [shape: f32[2,128,16], index: 0, kind: input, shape index: {}]
  %s1 = inlined_call_operand.vmem [shape: f32[16,50], index: 1, kind: input, shape index: {}]
  %s2 = inlined_call_operand.vmem [shape: f32[1,50], index: 2, kind: input, shape index: {}]
  %s3 = inlined_call_operand.vmem [shape: f32[50,50], index: 3, kind: input, shape index: {}]
  %s4 = inlined_call_operand.vmem [shape: f32[1,50], index: 4, kind: input, shape index: {}]
  %s5 = inlined_call_operand.vmem [shape: f32[50,16], index: 5, kind: input, shape index: {}]
  %s6 = inlined_call_operand.vmem [shape: f32[1,16], index: 6, kind: input, shape index: {}]
  %s7 = inlined_call_operand.vmem [shape: f32[2,8,8], index: 7, kind: input, shape index: {}]
  %s8 = inlined_call_operand.vmem [shape: f32[8,1], index: 8, kind: input, shape index: {}]
  %s9 = inlined_call_operand.vmem [shape: f32[2,3,8,8], index: 9, kind: output, shape index: {}]
  %s10 = sld [smem:[#allocation0]]
  $region69: #{latent_mixture_forward.1} parent=0
    _
  %s12 = ssub.s32 1, %s10
  %s13 = scalar_select 0, %s12, %s10
  loop: start=0, step=1, limit=4
  $region2: #{latent_mixture_forward.1} parent=0 // loop_pre_header
    _
  $region3: #{latent_mixture_forward.1} parent=0 // loop_header
    %s15 = sphi 0, %s19
    %p16 = scmp.ge.s32.totalorder %s15, 4
    %s25 = sphi 0, %s27
    %s28 = sphi 0, %s25
    %s29 = sphi 0, %s28
    %s45 = sphi 0, %s29
    %s49 = sphi 0, %s49
    %s51 = sphi 0, %s49
    %s52 = sphi 0, %s51
    %s66 = sphi 0, %s52
    %s70 = sphi 0, %s70
    %s72 = sphi 0, %s70
    %s73 = sphi 0, %s72
    %s87 = sphi 0, %s73
    %s91 = sphi 0, %s91
    %s93 = sphi 0, %s91
    %s94 = sphi 0, %s93
    %s108 = sphi 0, %s94
    %s112 = sphi 0, %s112
    %s114 = sphi 0, %s112
    %s115 = sphi 0, %s114
    %s129 = sphi 0, %s115
    %s133 = sphi 0, %s133
    %s135 = sphi 0, %s133
    %s136 = sphi 0, %s135
    %s150 = sphi 0, %s136
    %s154 = sphi 0, %s154
    %s156 = sphi 0, %s154
    %s157 = sphi 0, %s156
    %s171 = sphi 0, %s157
    %s177 = sphi 0, %s179
    %s180 = sphi 0, %s177
    %s181 = sphi 0, %s180
    %s197 = sphi 0, %s181
    %s201 = sphi 0, %s201
    %s203 = sphi 0, %s201
    %s204 = sphi 0, %s203
    %s218 = sphi 0, %s204
    %s224 = sphi 0, %s226
    %s227 = sphi 0, %s224
    %s228 = sphi 0, %s227
    %s244 = sphi 0, %s228
  $region4: #{latent_mixture_forward.1} parent=0 // loop_header_branch
    %18 = sbr.rel (%p16) target = $region8
  $region5: #{latent_mixture_forward.1} parent=0 // loop_body
    %s20 = ssub.s32 %s15, 1
    %s21 = ssub.s32 %s15, 2
    %s22 = sadd.s32 %s15, 1
    %s23 = ssub.s32 %s15, %s22
    %p24 = scmp.eq.s32.totalorder %s23, 0
    %s26 = sadd.s32 %s25, 1
    %s27 = scalar_select %p24, %s25, %s26
    %p30 = pneg %p24
    %p31 = scmp.eq.s32.totalorder %s15, 1
    %p32 = por %p30, %p31
    %p33 = scmp.ne.s32.totalorder %s25, %s28
    %p34 = scmp.eq.s32.totalorder %s15, 0
    %p35 = por %p33, %p34
    %p36 = scmp.ne.s32.totalorder %s25, %s28
    %p37 = scmp.eq.s32.totalorder %s20, 1
    %p38 = por %p36, %p37
    %p39 = scmp.ne.s32.totalorder %s28, %s29
    %p40 = scmp.eq.s32.totalorder %s20, 0
    %p41 = por %p39, %p40
    %p42 = scmp.ne.s32.totalorder %s28, %s29
    %p43 = scmp.eq.s32.totalorder %s21, 1
    %p44 = por %p42, %p43
    %p46 = scmp.ne.s32.totalorder %s29, %s45
    %p47 = scmp.eq.s32.totalorder %s21, 0
    %p48 = por %p46, %p47
    %s50 = sadd.s32 %s49, 1
    %p53 = scmp.eq.s32.totalorder %s15, 1
    %p54 = scmp.ne.s32.totalorder %s49, %s51
    %p55 = scmp.eq.s32.totalorder %s15, 0
    %p56 = por %p54, %p55
    %p57 = scmp.ne.s32.totalorder %s49, %s51
    %p58 = scmp.eq.s32.totalorder %s20, 1
    %p59 = por %p57, %p58
    %p60 = scmp.ne.s32.totalorder %s51, %s52
    %p61 = scmp.eq.s32.totalorder %s20, 0
    %p62 = por %p60, %p61
    %p63 = scmp.ne.s32.totalorder %s51, %s52
    %p64 = scmp.eq.s32.totalorder %s21, 1
    %p65 = por %p63, %p64
    %p67 = scmp.ne.s32.totalorder %s52, %s66
    %p68 = scmp.eq.s32.totalorder %s21, 0
    %p69 = por %p67, %p68
    %s71 = sadd.s32 %s70, 1
    %p74 = scmp.eq.s32.totalorder %s15, 1
    %p75 = scmp.ne.s32.totalorder %s70, %s72
    %p76 = scmp.eq.s32.totalorder %s15, 0
    %p77 = por %p75, %p76
    %p78 = scmp.ne.s32.totalorder %s70, %s72
    %p79 = scmp.eq.s32.totalorder %s20, 1
    %p80 = por %p78, %p79
    %p81 = scmp.ne.s32.totalorder %s72, %s73
    %p82 = scmp.eq.s32.totalorder %s20, 0
    %p83 = por %p81, %p82
    %p84 = scmp.ne.s32.totalorder %s72, %s73
    %p85 = scmp.eq.s32.totalorder %s21, 1
    %p86 = por %p84, %p85
    %p88 = scmp.ne.s32.totalorder %s73, %s87
    %p89 = scmp.eq.s32.totalorder %s21, 0
    %p90 = por %p88, %p89
    %s92 = sadd.s32 %s91, 1
    %p95 = scmp.eq.s32.totalorder %s15, 1
    %p96 = scmp.ne.s32.totalorder %s91, %s93
    %p97 = scmp.eq.s32.totalorder %s15, 0
    %p98 = por %p96, %p97
    %p99 = scmp.ne.s32.totalorder %s91, %s93
    %p100 = scmp.eq.s32.totalorder %s20, 1
    %p101 = por %p99, %p100
    %p102 = scmp.ne.s32.totalorder %s93, %s94
    %p103 = scmp.eq.s32.totalorder %s20, 0
    %p104 = por %p102, %p103
    %p105 = scmp.ne.s32.totalorder %s93, %s94
    %p106 = scmp.eq.s32.totalorder %s21, 1
    %p107 = por %p105, %p106
    %p109 = scmp.ne.s32.totalorder %s94, %s108
    %p110 = scmp.eq.s32.totalorder %s21, 0
    %p111 = por %p109, %p110
    %s113 = sadd.s32 %s112, 1
    %p116 = scmp.eq.s32.totalorder %s15, 1
    %p117 = scmp.ne.s32.totalorder %s112, %s114
    %p118 = scmp.eq.s32.totalorder %s15, 0
    %p119 = por %p117, %p118
    %p120 = scmp.ne.s32.totalorder %s112, %s114
    %p121 = scmp.eq.s32.totalorder %s20, 1
    %p122 = por %p120, %p121
    %p123 = scmp.ne.s32.totalorder %s114, %s115
    %p124 = scmp.eq.s32.totalorder %s20, 0
    %p125 = por %p123, %p124
    %p126 = scmp.ne.s32.totalorder %s114, %s115
    %p127 = scmp.eq.s32.totalorder %s21, 1
    %p128 = por %p126, %p127
    %p130 = scmp.ne.s32.totalorder %s115, %s129
    %p131 = scmp.eq.s32.totalorder %s21, 0
    %p132 = por %p130, %p131
    %s134 = sadd.s32 %s133, 1
    %p137 = scmp.eq.s32.totalorder %s15, 1
    %p138 = scmp.ne.s32.totalorder %s133, %s135
    %p139 = scmp.eq.s32.totalorder %s15, 0
    %p140 = por %p138, %p139
    %p141 = scmp.ne.s32.totalorder %s133, %s135
    %p142 = scmp.eq.s32.totalorder %s20, 1
    %p143 = por %p141, %p142
    %p144 = scmp.ne.s32.totalorder %s135, %s136
    %p145 = scmp.eq.s32.totalorder %s20, 0
    %p146 = por %p144, %p145
    %p147 = scmp.ne.s32.totalorder %s135, %s136
    %p148 = scmp.eq.s32.totalorder %s21, 1
    %p149 = por %p147, %p148
    %p151 = scmp.ne.s32.totalorder %s136, %s150
    %p152 = scmp.eq.s32.totalorder %s21, 0
    %p153 = por %p151, %p152
    %s155 = sadd.s32 %s154, 1
    %p158 = scmp.eq.s32.totalorder %s15, 1
    %p159 = scmp.ne.s32.totalorder %s154, %s156
    %p160 = scmp.eq.s32.totalorder %s15, 0
    %p161 = por %p159, %p160
    %p162 = scmp.ne.s32.totalorder %s154, %s156
    %p163 = scmp.eq.s32.totalorder %s20, 1
    %p164 = por %p162, %p163
    %p165 = scmp.ne.s32.totalorder %s156, %s157
    %p166 = scmp.eq.s32.totalorder %s20, 0
    %p167 = por %p165, %p166
    %p168 = scmp.ne.s32.totalorder %s156, %s157
    %p169 = scmp.eq.s32.totalorder %s21, 1
    %p170 = por %p168, %p169
    %p172 = scmp.ne.s32.totalorder %s157, %s171
    %p173 = scmp.eq.s32.totalorder %s21, 0
    %p174 = por %p172, %p173
    %s175 = ssub.s32 %s15, %s22
    %p176 = scmp.eq.s32.totalorder %s175, 0
    %s178 = sadd.s32 %s177, 1
    %s179 = scalar_select %p176, %s177, %s178
    %p182 = pneg %p176
    %p183 = scmp.eq.s32.totalorder %s15, 1
    %p184 = por %p182, %p183
    %p185 = scmp.ne.s32.totalorder %s177, %s180
    %p186 = scmp.eq.s32.totalorder %s15, 0
    %p187 = por %p185, %p186
    %p188 = scmp.ne.s32.totalorder %s177, %s180
    %p189 = scmp.eq.s32.totalorder %s20, 1
    %p190 = por %p188, %p189
    %p191 = scmp.ne.s32.totalorder %s180, %s181
    %p192 = scmp.eq.s32.totalorder %s20, 0
    %p193 = por %p191, %p192
    %p194 = scmp.ne.s32.totalorder %s180, %s181
    %p195 = scmp.eq.s32.totalorder %s21, 1
    %p196 = por %p194, %p195
    %p198 = scmp.ne.s32.totalorder %s181, %s197
    %p199 = scmp.eq.s32.totalorder %s21, 0
    %p200 = por %p198, %p199
    %s202 = sadd.s32 %s201, 1
    %p205 = scmp.eq.s32.totalorder %s15, 1
    %p206 = scmp.ne.s32.totalorder %s201, %s203
    %p207 = scmp.eq.s32.totalorder %s15, 0
    %p208 = por %p206, %p207
    %p209 = scmp.ne.s32.totalorder %s201, %s203
    %p210 = scmp.eq.s32.totalorder %s20, 1
    %p211 = por %p209, %p210
    %p212 = scmp.ne.s32.totalorder %s203, %s204
    %p213 = scmp.eq.s32.totalorder %s20, 0
    %p214 = por %p212, %p213
    %p215 = scmp.ne.s32.totalorder %s203, %s204
    %p216 = scmp.eq.s32.totalorder %s21, 1
    %p217 = por %p215, %p216
    %p219 = scmp.ne.s32.totalorder %s204, %s218
    %p220 = scmp.eq.s32.totalorder %s21, 0
    %p221 = por %p219, %p220
    %s222 = ssub.s32 %s15, %s22
    %p223 = scmp.eq.s32.totalorder %s222, 0
    %s225 = sadd.s32 %s224, 1
    %s226 = scalar_select %p223, %s224, %s225
    %p229 = pneg %p223
    %p230 = scmp.eq.s32.totalorder %s15, 1
    %p231 = por %p229, %p230
    %p232 = scmp.ne.s32.totalorder %s224, %s227
    %p233 = scmp.eq.s32.totalorder %s15, 0
    %p234 = por %p232, %p233
    %p235 = scmp.ne.s32.totalorder %s224, %s227
    %p236 = scmp.eq.s32.totalorder %s20, 1
    %p237 = por %p235, %p236
    %p238 = scmp.ne.s32.totalorder %s227, %s228
    %p239 = scmp.eq.s32.totalorder %s20, 0
    %p240 = por %p238, %p239
    %p241 = scmp.ne.s32.totalorder %s227, %s228
    %p242 = scmp.eq.s32.totalorder %s21, 1
    %p243 = por %p241, %p242
    %p245 = scmp.ne.s32.totalorder %s228, %s244
    %p246 = scmp.eq.s32.totalorder %s21, 0
    %p247 = por %p245, %p246
    %p248 = scmp.le.s32.totalorder 1, %s15
    %p249 = scmp.lt.s32.totalorder %s15, 3
    %p250 = pnand %p248, %p249
    %p251 = pneg %p250
    // Predicated region
    $region9: #{latent_mixture_forward.1} parent=5 // pred_check
      _
    $region10: #{latent_mixture_forward.1} parent=5 // pred_check_branch
      %253 = sbr.rel (%p250) target = $region12
    $region11: #{latent_mixture_forward.1} parent=5 // pred_region
      %s254 = ssub.s32 %s15, 1
      // Predicated region
      $region13: #{latent_mixture_forward.1} parent=11 // pred_check
        %p255 = pneg %p62
      $region14: #{latent_mixture_forward.1} parent=11 // pred_check_branch
        %257 = sbr.rel (%p255) target = $region16
      $region15: #{latent_mixture_forward.1} parent=11 // pred_region
        _
      $region16: #{latent_mixture_forward.1} parent=11 // pred_fallthru
        _
      // Predicated region
      $region17: #{latent_mixture_forward.1} parent=11 // pred_check
        %p258 = pneg %p83
      $region18: #{latent_mixture_forward.1} parent=11 // pred_check_branch
        %260 = sbr.rel (%p258) target = $region20
      $region19: #{latent_mixture_forward.1} parent=11 // pred_region
        _
      $region20: #{latent_mixture_forward.1} parent=11 // pred_fallthru
        _
      // Predicated region
      $region21: #{latent_mixture_forward.1} parent=11 // pred_check
        %p261 = pneg %p104
      $region22: #{latent_mixture_forward.1} parent=11 // pred_check_branch
        %263 = sbr.rel (%p261) target = $region24
      $region23: #{latent_mixture_forward.1} parent=11 // pred_region
        _
      $region24: #{latent_mixture_forward.1} parent=11 // pred_fallthru
        _
      // Predicated region
      $region25: #{latent_mixture_forward.1} parent=11 // pred_check
        %p264 = pneg %p125
      $region26: #{latent_mixture_forward.1} parent=11 // pred_check_branch
        %266 = sbr.rel (%p264) target = $region28
      $region27: #{latent_mixture_forward.1} parent=11 // pred_region
        _
      $region28: #{latent_mixture_forward.1} parent=11 // pred_fallthru
        _
      // Predicated region
      $region29: #{latent_mixture_forward.1} parent=11 // pred_check
        %p267 = pneg %p146
      $region30: #{latent_mixture_forward.1} parent=11 // pred_check_branch
        %269 = sbr.rel (%p267) target = $region32
      $region31: #{latent_mixture_forward.1} parent=11 // pred_region
        _
      $region32: #{latent_mixture_forward.1} parent=11 // pred_fallthru
        _
      // Predicated region
      $region33: #{latent_mixture_forward.1} parent=11 // pred_check
        %p270 = pneg %p167
      $region34: #{latent_mixture_forward.1} parent=11 // pred_check_branch
        %272 = sbr.rel (%p270) target = $region36
      $region35: #{latent_mixture_forward.1} parent=11 // pred_region
        _
      $region36: #{latent_mixture_forward.1} parent=11 // pred_fallthru
        _
      // Predicated region
      $region37: #{latent_mixture_forward.1} parent=11 // pred_check
        %p273 = pneg %p214
      $region38: #{latent_mixture_forward.1} parent=11 // pred_check_branch
        %275 = sbr.rel (%p273) target = $region40
      $region39: #{latent_mixture_forward.1} parent=11 // pred_region
        _
      $region40: #{latent_mixture_forward.1} parent=11 // pred_fallthru
        _
    $region12: #{latent_mixture_forward.1} parent=5 // pred_fallthru
      _
    %p276 = scmp.lt.s32.totalorder %s15, 2
    // Predicated region
    $region41: #{latent_mixture_forward.1} parent=5 // pred_check
      %p277 = pneg %p276
    $region42: #{latent_mixture_forward.1} parent=5 // pred_check_branch
      %279 = sbr.rel (%p277) target = $region44
    $region43: #{latent_mixture_forward.1} parent=5 // pred_region
      // Predicated region
      $region45: #{latent_mixture_forward.1} parent=43 // pred_check
        %p280 = pneg %p35
      $region46: #{latent_mixture_forward.1} parent=43 // pred_check_branch
        %282 = sbr.rel (%p280) target = $region48
      $region47: #{latent_mixture_forward.1} parent=43 // pred_region
        %p283 = scmp.lt.s32.totalorder %s15, 1
        %s284 = scalar_select %p283, %s15, 1
        %s285 = smul.addr %s284, 16
        %s286 = smul.addr %s285, 8
        %s287 = scalar_lea.vmem %s0, %s286
      $region48: #{latent_mixture_forward.1} parent=43 // pred_fallthru
        _
      // Predicated region
      $region49: #{latent_mixture_forward.1} parent=43 // pred_check
        %p288 = pneg %p187
      $region50: #{latent_mixture_forward.1} parent=43 // pred_check_branch
        %290 = sbr.rel (%p288) target = $region52
      $region51: #{latent_mixture_forward.1} parent=43 // pred_region
        %p291 = scmp.lt.s32.totalorder %s15, 1
        %s292 = scalar_select %p291, %s15, 1
        %s293 = smul.addr %s292, 8
        %s294 = scalar_lea.vmem %s7, %s293
      $region52: #{latent_mixture_forward.1} parent=43 // pred_fallthru
        _
    $region44: #{latent_mixture_forward.1} parent=5 // pred_fallthru
      _
    %p295 = scmp.le.s32.totalorder 1, %s15
    %p296 = scmp.lt.s32.totalorder %s15, 3
    %p297 = pnand %p295, %p296
    %p298 = pneg %p297
    // Predicated region
    $region53: #{latent_mixture_forward.1} parent=5 // pred_check
      _
    $region54: #{latent_mixture_forward.1} parent=5 // pred_check_branch
      %300 = sbr.rel (%p297) target = $region56
    $region55: #{latent_mixture_forward.1} parent=5 // pred_region
      %s301 = ssub.s32 %s15, 1
      %p302 = scmp.lt.s32.totalorder %s20, 1
      %s303 = scalar_select %p302, %s20, 1
      %s304 = smul.addr %s303, 16
      %s305 = smul.addr %s304, 8
      %s306 = scalar_lea.vmem %s0, %s305
      %p307 = pneg %p41
      %p308 = pneg %p38
      %p309 = pneg %p62
      %p310 = pneg %p59
      %p311 = pneg %p83
      %p312 = pneg %p80
      %p313 = pneg %p104
      %p314 = pneg %p101
      %p315 = pneg %p125
      %p316 = pneg %p122
      %p317 = pneg %p146
      %p318 = pneg %p143
      %p319 = pneg %p167
      %p320 = pneg %p164
      %p321 = scmp.lt.s32.totalorder %s20, 1
      %s322 = scalar_select %p321, %s20, 1
      %s323 = smul.addr %s322, 8
      %s324 = scalar_lea.vmem %s7, %s323
      %p325 = pneg %p193
      %p326 = pneg %p190
      %p327 = pneg %p214
      %p328 = pneg %p211
      %p329 = pneg %p240
      %p330 = pneg %p237
      %p331 = scmp.lt.s32.totalorder %s20, 1
      %s332 = scalar_select %p331, %s20, 1
      %s333 = smul.addr %s332, 3
      %s334 = smul.addr %s333, 8
      %s335 = scalar_lea.vmem %s9, %s334
      %p336 = scmp.lt.s32.totalorder %s20, 1
      %s337 = scalar_select %p336, %s20, 1
      %s338 = smul.addr %s337, 16
      %s339 = smul.addr %s338, 8
      %s340 = scalar_lea.vmem %s0, %s339
      %p341 = scmp.lt.s32.totalorder %s20, 1
      %s342 = scalar_select %p341, %s20, 1
      %s343 = smul.addr %s342, 8
      %s344 = scalar_lea.vmem %s7, %s343
      %p345 = scmp.lt.s32.totalorder %s20, 1
      %s346 = scalar_select %p345, %s20, 1
      %s347 = smul.addr %s346, 3
      %s348 = smul.addr %s347, 8
      %s349 = scalar_lea.vmem %s9, %s348
      %v350 = vld [vmem:[%s340] sm:$0xff]
      %v351 = vld [vmem:[%s340 + $0x8] sm:$0xff]
      %v352 = vld [vmem:[%s340 + $0x10] sm:$0xff]
      %v353 = vld [vmem:[%s340 + $0x18] sm:$0xff]
      %v354 = vld [vmem:[%s340 + $0x20] sm:$0xff]
      %v355 = vld [vmem:[%s340 + $0x28] sm:$0xff]
      %v356 = vld [vmem:[%s340 + $0x30] sm:$0xff]
      %v357 = vld [vmem:[%s340 + $0x38] sm:$0xff]
      %v358 = vld [vmem:[%s340 + $0x40] sm:$0xff]
      %v359 = vld [vmem:[%s340 + $0x48] sm:$0xff]
      %v360 = vld [vmem:[%s340 + $0x50] sm:$0xff]
      %v361 = vld [vmem:[%s340 + $0x58] sm:$0xff]
      %v362 = vld [vmem:[%s340 + $0x60] sm:$0xff]
      %v363 = vld [vmem:[%s340 + $0x68] sm:$0xff]
      %v364 = vld [vmem:[%s340 + $0x70] sm:$0xff]
      %v365 = vld [vmem:[%s340 + $0x78] sm:$0xff]
      %v366 = vld [vmem:[%s1] sm:$0xff]
      %v367 = vld [vmem:[%s1 + $0x8] sm:$0xff]
      %v368 = vld [vmem:[%s2] sm:$0x1]
      %v370 = vperm.slane %v368, 0
      %vm372 = vcmask 130048
      %v374 = vsel %vm372, %v350, 0
      %v377 = vsel %vm372, %v351, 0
      %v380 = vsel %vm372, %v352, 0
      %v383 = vsel %vm372, %v353, 0
      %v386 = vsel %vm372, %v354, 0
      %v389 = vsel %vm372, %v355, 0
      %v392 = vsel %vm372, %v356, 0
      %v395 = vsel %vm372, %v357, 0
      %v398 = vsel %vm372, %v358, 0
      %v401 = vsel %vm372, %v359, 0
      %v404 = vsel %vm372, %v360, 0
      %v407 = vsel %vm372, %v361, 0
      %v410 = vsel %vm372, %v362, 0
      %v413 = vsel %vm372, %v363, 0
      %v416 = vsel %vm372, %v364, 0
      %v419 = vsel %vm372, %v365, 0
      %421 = vmatpush.msra.mxu0 0.0
      %422 = vmatpush.msra.mxu0 0.0
      %423 = vmatpush.msra.mxu0 0.0
      %424 = vmatpush.msra.mxu0 0.0
      %425 = vmatpush.msra.mxu0 0.0
      %426 = vmatpush.msra.mxu0 0.0
      %427 = vmatpush.msra.mxu0 0.0
      %428 = vmatpush.msra.mxu0 0.0
      %429 = vmatpush.msra.mxu0 0.0
      %430 = vmatpush.msra.mxu0 0.0
      %431 = vmatpush.msra.mxu0 0.0
      %432 = vmatpush.msra.mxu0 0.0
      %433 = vmatpush.msra.mxu0 0.0
      %434 = vmatpush.msra.mxu0 0.0
      %435 = vmatpush.msra.mxu0 %v367
      %436 = vmatpush.msra.mxu0 %v366
      %437 = vmatmul.f32.gmra.mxu0 %v374
      %v438 = vpop.f32.mrf.mxu0
      %v439 = vadd.f32 %v370, %v438
      %440 = vmatmul.f32.gmra.mxu0 %v377
      %v441 = vpop.f32.mrf.mxu0
      %v442 = vadd.f32 %v370, %v441
      %443 = vmatmul.f32.gmra.mxu0 %v380
      %v444 = vpop.f32.mrf.mxu0
      %v445 = vadd.f32 %v370, %v444
      %446 = vmatmul.f32.gmra.mxu0 %v383
      %v447 = vpop.f32.mrf.mxu0
      %v448 = vadd.f32 %v370, %v447
      %449 = vmatmul.f32.gmra.mxu0 %v386
      %v450 = vpop.f32.mrf.mxu0
      %v451 = vadd.f32 %v370, %v450
      %452 = vmatmul.f32.gmra.mxu0 %v389
      %v453 = vpop.f32.mrf.mxu0
      %v454 = vadd.f32 %v370, %v453
      %455 = vmatmul.f32.gmra.mxu0 %v392
      %v456 = vpop.f32.mrf.mxu0
      %v457 = vadd.f32 %v370, %v456
      %458 = vmatmul.f32.gmra.mxu0 %v395
      %v459 = vpop.f32.mrf.mxu0
      %v460 = vadd.f32 %v370, %v459
      %461 = vmatmul.f32.gmra.mxu0 %v398
      %v462 = vpop.f32.mrf.mxu0
      %v463 = vadd.f32 %v370, %v462
      %464 = vmatmul.f32.gmra.mxu0 %v401
      %v465 = vpop.f32.mrf.mxu0
      %v466 = vadd.f32 %v370, %v465
      %467 = vmatmul.f32.gmra.mxu0 %v404
      %v468 = vpop.f32.mrf.mxu0
      %v469 = vadd.f32 %v370, %v468
      %470 = vmatmul.f32.gmra.mxu0 %v407
      %v471 = vpop.f32.mrf.mxu0
      %v472 = vadd.f32 %v370, %v471
      %473 = vmatmul.f32.gmra.mxu0 %v410
      %v474 = vpop.f32.mrf.mxu0
      %v475 = vadd.f32 %v370, %v474
      %476 = vmatmul.f32.gmra.mxu0 %v413
      %v477 = vpop.f32.mrf.mxu0
      %v478 = vadd.f32 %v370, %v477
      %479 = vmatmul.f32.gmra.mxu0 %v416
      %v480 = vpop.f32.mrf.mxu0
      %v481 = vadd.f32 %v370, %v480
      %482 = vmatmul.f32.gmra.mxu0 %v419
      %v483 = vpop.f32.mrf.mxu0
      %v484 = vadd.f32 %v370, %v483
      %485 = vdwg.mxu0
      %v486 = vmax.f32 %v439, 0.0
      %v487 = vmax.f32 %v442, 0.0
      %v488 = vmax.f32 %v445, 0.0
      %v489 = vmax.f32 %v448, 0.0
      %v490 = vmax.f32 %v451, 0.0
      %v491 = vmax.f32 %v454, 0.0
      %v492 = vmax.f32 %v457, 0.0
      %v493 = vmax.f32 %v460, 0.0
      %v494 = vmax.f32 %v463, 0.0
      %v495 = vmax.f32 %v466, 0.0
      %v496 = vmax.f32 %v469, 0.0
      %v497 = vmax.f32 %v472, 0.0
      %v498 = vmax.f32 %v475, 0.0
      %v499 = vmax.f32 %v478, 0.0
      %v500 = vmax.f32 %v481, 0.0
      %v501 = vmax.f32 %v484, 0.0
      %v502 = vand.u32 2147483647, %v439
      %v503 = vand.u32 2147483647, %v442
      %v504 = vand.u32 2147483647, %v445
      %v505 = vand.u32 2147483647, %v448
      %v506 = vand.u32 2147483647, %v451
      %v507 = vand.u32 2147483647, %v454
      %v508 = vand.u32 2147483647, %v457
      %v509 = vand.u32 2147483647, %v460
      %v510 = vand.u32 2147483647, %v463
      %v511 = vand.u32 2147483647, %v466
      %v512 = vand.u32 2147483647, %v469
      %v513 = vand.u32 2147483647, %v472
      %v514 = vand.u32 2147483647, %v475
      %v515 = vand.u32 2147483647, %v478
      %v516 = vand.u32 2147483647, %v481
      %v517 = vand.u32 2147483647, %v484
      %v518 = vsub.f32 0.0, %v502
      %v519 = vsub.f32 0.0, %v503
      %v520 = vsub.f32 0.0, %v504
      %v521 = vsub.f32 0.0, %v505
      %v522 = vsub.f32 0.0, %v506
      %v523 = vsub.f32 0.0, %v507
      %v524 = vsub.f32 0.0, %v508
      %v525 = vsub.f32 0.0, %v509
      %v526 = vsub.f32 0.0, %v510
      %v527 = vsub.f32 0.0, %v511
      %v528 = vsub.f32 0.0, %v512
      %v529 = vsub.f32 0.0, %v513
      %v530 = vsub.f32 0.0, %v514
      %v531 = vsub.f32 0.0, %v515
      %v532 = vsub.f32 0.0, %v516
      %v533 = vsub.f32 0.0, %v517
      %v534 = vmul.f32 %v518, 1.442695
      %v535 = vpow.pop %v534
      %v536 = vmul.f32 %v519, 1.442695
      %v537 = vpow.pop %v536
      %v538 = vmul.f32 %v520, 1.442695
      %v539 = vpow.pop %v538
      %v540 = vmul.f32 %v521, 1.442695
      %v541 = vpow.pop %v540
      %v542 = vmul.f32 %v522, 1.442695
      %v543 = vpow.pop %v542
      %v544 = vmul.f32 %v523, 1.442695
      %v545 = vpow.pop %v544
      %v546 = vmul.f32 %v524, 1.442695
      %v547 = vpow.pop %v546
      %v548 = vmul.f32 %v525, 1.442695
      %v549 = vpow.pop %v548
      %v550 = vmul.f32 %v526, 1.442695
      %v551 = vpow.pop %v550
      %v552 = vmul.f32 %v527, 1.442695
      %v553 = vpow.pop %v552
      %v554 = vmul.f32 %v528, 1.442695
      %v555 = vpow.pop %v554
      %v556 = vmul.f32 %v529, 1.442695
      %v557 = vpow.pop %v556
      %v558 = vmul.f32 %v530, 1.442695
      %v559 = vpow.pop %v558
      %v560 = vmul.f32 %v531, 1.442695
      %v561 = vpow.pop %v560
      %v562 = vmul.f32 %v532, 1.442695
      %v563 = vpow.pop %v562
      %v564 = vmul.f32 %v533, 1.442695
      %v565 = vpow.pop %v564
      %v566 = vadd.f32 %v535, 1.0
      %v567 = vlog2.pop %v566
      %v568 = vmul.f32 %v567, 0.6931472
      %v569 = vmul.f32 -0.5, %v535
      %v570 = vadd.f32 %v569, 1.0
      %v571 = vmul.f32 %v570, %v535
      %v572 = vand.u32 2147483647, %v535
      %vm573 = vcmp.lt.f32.partialorder %v572, 0.0004427343
      %v574 = vsel %vm573, %v571, %v568
      %v575 = vadd.f32 %v537, 1.0
      %v576 = vlog2.pop %v575
      %v577 = vmul.f32 %v576, 0.6931472
      %v578 = vmul.f32 -0.5, %v537
      %v579 = vadd.f32 %v578, 1.0
      %v580 = vmul.f32 %v579, %v537
      %v581 = vand.u32 2147483647, %v537
      %vm582 = vcmp.lt.f32.partialorder %v581, 0.0004427343
      %v583 = vsel %vm582, %v580, %v577
      %v584 = vadd.f32 %v539, 1.0
      %v585 = vlog2.pop %v584
      %v586 = vmul.f32 %v585, 0.6931472
      %v587 = vmul.f32 -0.5, %v539
      %v588 = vadd.f32 %v587, 1.0
      %v589 = vmul.f32 %v588, %v539
      %v590 = vand.u32 2147483647, %v539
      %vm591 = vcmp.lt.f32.partialorder %v590, 0.0004427343
      %v592 = vsel %vm591, %v589, %v586
      %v593 = vadd.f32 %v541, 1.0
      %v594 = vlog2.pop %v593
      %v595 = vmul.f32 %v594, 0.6931472
      %v596 = vmul.f32 -0.5, %v541
      %v597 = vadd.f32 %v596, 1.0
      %v598 = vmul.f32 %v597, %v541
      %v599 = vand.u32 2147483647, %v541
      %vm600 = vcmp.lt.f32.partialorder %v599, 0.0004427343
      %v601 = vsel %vm600, %v598, %v595
      %v602 = vadd.f32 %v543, 1.0
      %v603 = vlog2.pop %v602
      %v604 = vmul.f32 %v603, 0.6931472
      %v605 = vmul.f32 -0.5, %v543
      %v606 = vadd.f32 %v605, 1.0
      %v607 = vmul.f32 %v606, %v543
      %v608 = vand.u32 2147483647, %v543
      %vm609 = vcmp.lt.f32.partialorder %v608, 0.0004427343
      %v610 = vsel %vm609, %v607, %v604
      %v611 = vadd.f32 %v545, 1.0
      %v612 = vlog2.pop %v611
      %v613 = vmul.f32 %v612, 0.6931472
      %v614 = vmul.f32 -0.5, %v545
      %v615 = vadd.f32 %v614, 1.0
      %v616 = vmul.f32 %v615, %v545
      %v617 = vand.u32 2147483647, %v545
      %vm618 = vcmp.lt.f32.partialorder %v617, 0.0004427343
      %v619 = vsel %vm618, %v616, %v613
      %v620 = vadd.f32 %v547, 1.0
      %v621 = vlog2.pop %v620
      %v622 = vmul.f32 %v621, 0.6931472
      %v623 = vmul.f32 -0.5, %v547
      %v624 = vadd.f32 %v623, 1.0
      %v625 = vmul.f32 %v624, %v547
      %v626 = vand.u32 2147483647, %v547
      %vm627 = vcmp.lt.f32.partialorder %v626, 0.0004427343
      %v628 = vsel %vm627, %v625, %v622
      %v629 = vadd.f32 %v549, 1.0
      %v630 = vlog2.pop %v629
      %v631 = vmul.f32 %v630, 0.6931472
      %v632 = vmul.f32 -0.5, %v549
      %v633 = vadd.f32 %v632, 1.0
      %v634 = vmul.f32 %v633, %v549
      %v635 = vand.u32 2147483647, %v549
      %vm636 = vcmp.lt.f32.partialorder %v635, 0.0004427343
      %v637 = vsel %vm636, %v634, %v631
      %v638 = vadd.f32 %v551, 1.0
      %v639 = vlog2.pop %v638
      %v640 = vmul.f32 %v639, 0.6931472
      %v641 = vmul.f32 -0.5, %v551
      %v642 = vadd.f32 %v641, 1.0
      %v643 = vmul.f32 %v642, %v551
      %v644 = vand.u32 2147483647, %v551
      %vm645 = vcmp.lt.f32.partialorder %v644, 0.0004427343
      %v646 = vsel %vm645, %v643, %v640
      %v647 = vadd.f32 %v553, 1.0
      %v648 = vlog2.pop %v647
      %v649 = vmul.f32 %v648, 0.6931472
      %v650 = vmul.f32 -0.5, %v553
      %v651 = vadd.f32 %v650, 1.0
      %v652 = vmul.f32 %v651, %v553
      %v653 = vand.u32 2147483647, %v553
      %vm654 = vcmp.lt.f32.partialorder %v653, 0.0004427343
      %v655 = vsel %vm654, %v652, %v649
      %v656 = vadd.f32 %v555, 1.0
      %v657 = vlog2.pop %v656
      %v658 = vmul.f32 %v657, 0.6931472
      %v659 = vmul.f32 -0.5, %v555
      %v660 = vadd.f32 %v659, 1.0
      %v661 = vmul.f32 %v660, %v555
      %v662 = vand.u32 2147483647, %v555
      %vm663 = vcmp.lt.f32.partialorder %v662, 0.0004427343
      %v664 = vsel %vm663, %v661, %v658
      %v665 = vadd.f32 %v557, 1.0
      %v666 = vlog2.pop %v665
      %v667 = vmul.f32 %v666, 0.6931472
      %v668 = vmul.f32 -0.5, %v557
      %v669 = vadd.f32 %v668, 1.0
      %v670 = vmul.f32 %v669, %v557
      %v671 = vand.u32 2147483647, %v557
      %vm672 = vcmp.lt.f32.partialorder %v671, 0.0004427343
      %v673 = vsel %vm672, %v670, %v667
      %v674 = vadd.f32 %v559, 1.0
      %v675 = vlog2.pop %v674
      %v676 = vmul.f32 %v675, 0.6931472
      %v677 = vmul.f32 -0.5, %v559
      %v678 = vadd.f32 %v677, 1.0
      %v679 = vmul.f32 %v678, %v559
      %v680 = vand.u32 2147483647, %v559
      %vm681 = vcmp.lt.f32.partialorder %v680, 0.0004427343
      %v682 = vsel %vm681, %v679, %v676
      %v683 = vadd.f32 %v561, 1.0
      %v684 = vlog2.pop %v683
      %v685 = vmul.f32 %v684, 0.6931472
      %v686 = vmul.f32 -0.5, %v561
      %v687 = vadd.f32 %v686, 1.0
      %v688 = vmul.f32 %v687, %v561
      %v689 = vand.u32 2147483647, %v561
      %vm690 = vcmp.lt.f32.partialorder %v689, 0.0004427343
      %v691 = vsel %vm690, %v688, %v685
      %v692 = vadd.f32 %v563, 1.0
      %v693 = vlog2.pop %v692
      %v694 = vmul.f32 %v693, 0.6931472
      %v695 = vmul.f32 -0.5, %v563
      %v696 = vadd.f32 %v695, 1.0
      %v697 = vmul.f32 %v696, %v563
      %v698 = vand.u32 2147483647, %v563
      %vm699 = vcmp.lt.f32.partialorder %v698, 0.0004427343
      %v700 = vsel %vm699, %v697, %v694
      %v701 = vadd.f32 %v565, 1.0
      %v702 = vlog2.pop %v701
      %v703 = vmul.f32 %v702, 0.6931472
      %v704 = vmul.f32 -0.5, %v565
      %v705 = vadd.f32 %v704, 1.0
      %v706 = vmul.f32 %v705, %v565
      %v707 = vand.u32 2147483647, %v565
      %vm708 = vcmp.lt.f32.partialorder %v707, 0.0004427343
      %v709 = vsel %vm708, %v706, %v703
      %v710 = vadd.f32 %v486, %v574
      %v711 = vadd.f32 %v487, %v583
      %v712 = vadd.f32 %v488, %v592
      %v713 = vadd.f32 %v489, %v601
      %v714 = vadd.f32 %v490, %v610
      %v715 = vadd.f32 %v491, %v619
      %v716 = vadd.f32 %v492, %v628
      %v717 = vadd.f32 %v493, %v637
      %v718 = vadd.f32 %v494, %v646
      %v719 = vadd.f32 %v495, %v655
      %v720 = vadd.f32 %v496, %v664
      %v721 = vadd.f32 %v497, %v673
      %v722 = vadd.f32 %v498, %v682
      %v723 = vadd.f32 %v499, %v691
      %v724 = vadd.f32 %v500, %v700
      %v725 = vadd.f32 %v501, %v709
      %v726 = vld [vmem:[%s3] sm:$0xff]
      %v727 = vld [vmem:[%s3 + $0x8] sm:$0xff]
      %v728 = vld [vmem:[%s3 + $0x10] sm:$0xff]
      %v729 = vld [vmem:[%s3 + $0x18] sm:$0xff]
      %v730 = vld [vmem:[%s3 + $0x20] sm:$0xff]
      %v731 = vld [vmem:[%s3 + $0x28] sm:$0xff]
      %v732 = vld [vmem:[%s3 + $0x30] sm:$0x3]
      %v733 = vld [vmem:[%s4] sm:$0x1]
      %v735 = vperm.slane %v733, 0
      %vm737 = vcmask 408576
      %v739 = vsel %vm737, %v710, 0
      %v742 = vsel %vm737, %v711, 0
      %v745 = vsel %vm737, %v712, 0
      %v748 = vsel %vm737, %v713, 0
      %v751 = vsel %vm737, %v714, 0
      %v754 = vsel %vm737, %v715, 0
      %v757 = vsel %vm737, %v716, 0
      %v760 = vsel %vm737, %v717, 0
      %v763 = vsel %vm737, %v718, 0
      %v766 = vsel %vm737, %v719, 0
      %v769 = vsel %vm737, %v720, 0
      %v772 = vsel %vm737, %v721, 0
      %v775 = vsel %vm737, %v722, 0
      %v778 = vsel %vm737, %v723, 0
      %v781 = vsel %vm737, %v724, 0
      %v784 = vsel %vm737, %v725, 0
      %vm786 = vcmask 1041408
      %v788 = vsel %vm786, %v732, 0
      %790 = vmatpush.msra.mxu0 0.0
      %791 = vmatpush.msra.mxu0 0.0
      %792 = vmatpush.msra.mxu0 0.0
      %793 = vmatpush.msra.mxu0 0.0
      %794 = vmatpush.msra.mxu0 0.0
      %795 = vmatpush.msra.mxu0 0.0
      %796 = vmatpush.msra.mxu0 0.0
      %797 = vmatpush.msra.mxu0 0.0
      %798 = vmatpush.msra.mxu0 0.0
      %799 = vmatpush.msra.mxu0 %v788
      %800 = vmatpush.msra.mxu0 %v731
      %801 = vmatpush.msra.mxu0 %v730
      %802 = vmatpush.msra.mxu0 %v729
      %803 = vmatpush.msra.mxu0 %v728
      %804 = vmatpush.msra.mxu0 %v727
      %805 = vmatpush.msra.mxu0 %v726
      %806 = vmatmul.f32.gmra.mxu0 %v739
      %v807 = vpop.f32.mrf.mxu0
      %v808 = vadd.f32 %v735, %v807
      %809 = vmatmul.f32.gmra.mxu0 %v742
      %v810 = vpop.f32.mrf.mxu0
      %v811 = vadd.f32 %v735, %v810
      %812 = vmatmul.f32.gmra.mxu0 %v745
      %v813 = vpop.f32.mrf.mxu0
      %v814 = vadd.f32 %v735, %v813
      %815 = vmatmul.f32.gmra.mxu0 %v748
      %v816 = vpop.f32.mrf.mxu0
      %v817 = vadd.f32 %v735, %v816
      %818 = vmatmul.f32.gmra.mxu0 %v751
      %v819 = vpop.f32.mrf.mxu0
      %v820 = vadd.f32 %v735, %v819
      %821 = vmatmul.f32.gmra.mxu0 %v754
      %v822 = vpop.f32.mrf.mxu0
      %v823 = vadd.f32 %v735, %v822
      %824 = vmatmul.f32.gmra.mxu0 %v757
      %v825 = vpop.f32.mrf.mxu0
      %v826 = vadd.f32 %v735, %v825
      %827 = vmatmul.f32.gmra.mxu0 %v760
      %v828 = vpop.f32.mrf.mxu0
      %v829 = vadd.f32 %v735, %v828
      %830 = vmatmul.f32.gmra.mxu0 %v763
      %v831 = vpop.f32.mrf.mxu0
      %v832 = vadd.f32 %v735, %v831
      %833 = vmatmul.f32.gmra.mxu0 %v766
      %v834 = vpop.f32.mrf.mxu0
      %v835 = vadd.f32 %v735, %v834
      %836 = vmatmul.f32.gmra.mxu0 %v769
      %v837 = vpop.f32.mrf.mxu0
      %v838 = vadd.f32 %v735, %v837
      %839 = vmatmul.f32.gmra.mxu0 %v772
      %v840 = vpop.f32.mrf.mxu0
      %v841 = vadd.f32 %v735, %v840
      %842 = vmatmul.f32.gmra.mxu0 %v775
      %v843 = vpop.f32.mrf.mxu0
      %v844 = vadd.f32 %v735, %v843
      %845 = vmatmul.f32.gmra.mxu0 %v778
      %v846 = vpop.f32.mrf.mxu0
      %v847 = vadd.f32 %v735, %v846
      %848 = vmatmul.f32.gmra.mxu0 %v781
      %v849 = vpop.f32.mrf.mxu0
      %v850 = vadd.f32 %v735, %v849
      %851 = vmatmul.f32.gmra.mxu0 %v784
      %v852 = vpop.f32.mrf.mxu0
      %v853 = vadd.f32 %v735, %v852
      %854 = vdwg.mxu0
      %v855 = vmax.f32 %v808, 0.0
      %v856 = vmax.f32 %v811, 0.0
      %v857 = vmax.f32 %v814, 0.0
      %v858 = vmax.f32 %v817, 0.0
      %v859 = vmax.f32 %v820, 0.0
      %v860 = vmax.f32 %v823, 0.0
      %v861 = vmax.f32 %v826, 0.0
      %v862 = vmax.f32 %v829, 0.0
      %v863 = vmax.f32 %v832, 0.0
      %v864 = vmax.f32 %v835, 0.0
      %v865 = vmax.f32 %v838, 0.0
      %v866 = vmax.f32 %v841, 0.0
      %v867 = vmax.f32 %v844, 0.0
      %v868 = vmax.f32 %v847, 0.0
      %v869 = vmax.f32 %v850, 0.0
      %v870 = vmax.f32 %v853, 0.0
      %v871 = vand.u32 2147483647, %v808
      %v872 = vand.u32 2147483647, %v811
      %v873 = vand.u32 2147483647, %v814
      %v874 = vand.u32 2147483647, %v817
      %v875 = vand.u32 2147483647, %v820
      %v876 = vand.u32 2147483647, %v823
      %v877 = vand.u32 2147483647, %v826
      %v878 = vand.u32 2147483647, %v829
      %v879 = vand.u32 2147483647, %v832
      %v880 = vand.u32 2147483647, %v835
      %v881 = vand.u32 2147483647, %v838
      %v882 = vand.u32 2147483647, %v841
      %v883 = vand.u32 2147483647, %v844
      %v884 = vand.u32 2147483647, %v847
      %v885 = vand.u32 2147483647, %v850
      %v886 = vand.u32 2147483647, %v853
      %v887 = vsub.f32 0.0, %v871
      %v888 = vsub.f32 0.0, %v872
      %v889 = vsub.f32 0.0, %v873
      %v890 = vsub.f32 0.0, %v874
      %v891 = vsub.f32 0.0, %v875
      %v892 = vsub.f32 0.0, %v876
      %v893 = vsub.f32 0.0, %v877
      %v894 = vsub.f32 0.0, %v878
      %v895 = vsub.f32 0.0, %v879
      %v896 = vsub.f32 0.0, %v880
      %v897 = vsub.f32 0.0, %v881
      %v898 = vsub.f32 0.0, %v882
      %v899 = vsub.f32 0.0, %v883
      %v900 = vsub.f32 0.0, %v884
      %v901 = vsub.f32 0.0, %v885
      %v902 = vsub.f32 0.0, %v886
      %v903 = vmul.f32 %v887, 1.442695
      %v904 = vpow.pop %v903
      %v905 = vmul.f32 %v888, 1.442695
      %v906 = vpow.pop %v905
      %v907 = vmul.f32 %v889, 1.442695
      %v908 = vpow.pop %v907
      %v909 = vmul.f32 %v890, 1.442695
      %v910 = vpow.pop %v909
      %v911 = vmul.f32 %v891, 1.442695
      %v912 = vpow.pop %v911
      %v913 = vmul.f32 %v892, 1.442695
      %v914 = vpow.pop %v913
      %v915 = vmul.f32 %v893, 1.442695
      %v916 = vpow.pop %v915
      %v917 = vmul.f32 %v894, 1.442695
      %v918 = vpow.pop %v917
      %v919 = vmul.f32 %v895, 1.442695
      %v920 = vpow.pop %v919
      %v921 = vmul.f32 %v896, 1.442695
      %v922 = vpow.pop %v921
      %v923 = vmul.f32 %v897, 1.442695
      %v924 = vpow.pop %v923
      %v925 = vmul.f32 %v898, 1.442695
      %v926 = vpow.pop %v925
      %v927 = vmul.f32 %v899, 1.442695
      %v928 = vpow.pop %v927
      %v929 = vmul.f32 %v900, 1.442695
      %v930 = vpow.pop %v929
      %v931 = vmul.f32 %v901, 1.442695
      %v932 = vpow.pop %v931
      %v933 = vmul.f32 %v902, 1.442695
      %v934 = vpow.pop %v933
      %v935 = vadd.f32 %v904, 1.0
      %v936 = vlog2.pop %v935
      %v937 = vmul.f32 %v936, 0.6931472
      %v938 = vmul.f32 -0.5, %v904
      %v939 = vadd.f32 %v938, 1.0
      %v940 = vmul.f32 %v939, %v904
      %v941 = vand.u32 2147483647, %v904
      %vm942 = vcmp.lt.f32.partialorder %v941, 0.0004427343
      %v943 = vsel %vm942, %v940, %v937
      %v944 = vadd.f32 %v906, 1.0
      %v945 = vlog2.pop %v944
      %v946 = vmul.f32 %v945, 0.6931472
      %v947 = vmul.f32 -0.5, %v906
      %v948 = vadd.f32 %v947, 1.0
      %v949 = vmul.f32 %v948, %v906
      %v950 = vand.u32 2147483647, %v906
      %vm951 = vcmp.lt.f32.partialorder %v950, 0.0004427343
      %v952 = vsel %vm951, %v949, %v946
      %v953 = vadd.f32 %v908, 1.0
      %v954 = vlog2.pop %v953
      %v955 = vmul.f32 %v954, 0.6931472
      %v956 = vmul.f32 -0.5, %v908
      %v957 = vadd.f32 %v956, 1.0
      %v958 = vmul.f32 %v957, %v908
      %v959 = vand.u32 2147483647, %v908
      %vm960 = vcmp.lt.f32.partialorder %v959, 0.0004427343
      %v961 = vsel %vm960, %v958, %v955
      %v962 = vadd.f32 %v910, 1.0
      %v963 = vlog2.pop %v962
      %v964 = vmul.f32 %v963, 0.6931472
      %v965 = vmul.f32 -0.5, %v910
      %v966 = vadd.f32 %v965, 1.0
      %v967 = vmul.f32 %v966, %v910
      %v968 = vand.u32 2147483647, %v910
      %vm969 = vcmp.lt.f32.partialorder %v968, 0.0004427343
      %v970 = vsel %vm969, %v967, %v964
      %v971 = vadd.f32 %v912, 1.0
      %v972 = vlog2.pop %v971
      %v973 = vmul.f32 %v972, 0.6931472
      %v974 = vmul.f32 -0.5, %v912
      %v975 = vadd.f32 %v974, 1.0
      %v976 = vmul.f32 %v975, %v912
      %v977 = vand.u32 2147483647, %v912
      %vm978 = vcmp.lt.f32.partialorder %v977, 0.0004427343
      %v979 = vsel %vm978, %v976, %v973
      %v980 = vadd.f32 %v914, 1.0
      %v981 = vlog2.pop %v980
      %v982 = vmul.f32 %v981, 0.6931472
      %v983 = vmul.f32 -0.5, %v914
      %v984 = vadd.f32 %v983, 1.0
      %v985 = vmul.f32 %v984, %v914
      %v986 = vand.u32 2147483647, %v914
      %vm987 = vcmp.lt.f32.partialorder %v986, 0.0004427343
      %v988 = vsel %vm987, %v985, %v982
      %v989 = vadd.f32 %v916, 1.0
      %v990 = vlog2.pop %v989
      %v991 = vmul.f32 %v990, 0.6931472
      %v992 = vmul.f32 -0.5, %v916
      %v993 = vadd.f32 %v992, 1.0
      %v994 = vmul.f32 %v993, %v916
      %v995 = vand.u32 2147483647, %v916
      %vm996 = vcmp.lt.f32.partialorder %v995, 0.0004427343
      %v997 = vsel %vm996, %v994, %v991
      %v998 = vadd.f32 %v918, 1.0
      %v999 = vlog2.pop %v998
      %v1000 = vmul.f32 %v999, 0.6931472
      %v1001 = vmul.f32 -0.5, %v918
      %v1002 = vadd.f32 %v1001, 1.0
      %v1003 = vmul.f32 %v1002, %v918
      %v1004 = vand.u32 2147483647, %v918
      %vm1005 = vcmp.lt.f32.partialorder %v1004, 0.0004427343
      %v1006 = vsel %vm1005, %v1003, %v1000
      %v1007 = vadd.f32 %v920, 1.0
      %v1008 = vlog2.pop %v1007
      %v1009 = vmul.f32 %v1008, 0.6931472
      %v1010 = vmul.f32 -0.5, %v920
      %v1011 = vadd.f32 %v1010, 1.0
      %v1012 = vmul.f32 %v1011, %v920
      %v1013 = vand.u32 2147483647, %v920
      %vm1014 = vcmp.lt.f32.partialorder %v1013, 0.0004427343
      %v1015 = vsel %vm1014, %v1012, %v1009
      %v1016 = vadd.f32 %v922, 1.0
      %v1017 = vlog2.pop %v1016
      %v1018 = vmul.f32 %v1017, 0.6931472
      %v1019 = vmul.f32 -0.5, %v922
      %v1020 = vadd.f32 %v1019, 1.0
      %v1021 = vmul.f32 %v1020, %v922
      %v1022 = vand.u32 2147483647, %v922
      %vm1023 = vcmp.lt.f32.partialorder %v1022, 0.0004427343
      %v1024 = vsel %vm1023, %v1021, %v1018
      %v1025 = vadd.f32 %v924, 1.0
      %v1026 = vlog2.pop %v1025
      %v1027 = vmul.f32 %v1026, 0.6931472
      %v1028 = vmul.f32 -0.5, %v924
      %v1029 = vadd.f32 %v1028, 1.0
      %v1030 = vmul.f32 %v1029, %v924
      %v1031 = vand.u32 2147483647, %v924
      %vm1032 = vcmp.lt.f32.partialorder %v1031, 0.0004427343
      %v1033 = vsel %vm1032, %v1030, %v1027
      %v1034 = vadd.f32 %v926, 1.0
      %v1035 = vlog2.pop %v1034
      %v1036 = vmul.f32 %v1035, 0.6931472
      %v1037 = vmul.f32 -0.5, %v926
      %v1038 = vadd.f32 %v1037, 1.0
      %v1039 = vmul.f32 %v1038, %v926
      %v1040 = vand.u32 2147483647, %v926
      %vm1041 = vcmp.lt.f32.partialorder %v1040, 0.0004427343
      %v1042 = vsel %vm1041, %v1039, %v1036
      %v1043 = vadd.f32 %v928, 1.0
      %v1044 = vlog2.pop %v1043
      %v1045 = vmul.f32 %v1044, 0.6931472
      %v1046 = vmul.f32 -0.5, %v928
      %v1047 = vadd.f32 %v1046, 1.0
      %v1048 = vmul.f32 %v1047, %v928
      %v1049 = vand.u32 2147483647, %v928
      %vm1050 = vcmp.lt.f32.partialorder %v1049, 0.0004427343
      %v1051 = vsel %vm1050, %v1048, %v1045
      %v1052 = vadd.f32 %v930, 1.0
      %v1053 = vlog2.pop %v1052
      %v1054 = vmul.f32 %v1053, 0.6931472
      %v1055 = vmul.f32 -0.5, %v930
      %v1056 = vadd.f32 %v1055, 1.0
      %v1057 = vmul.f32 %v1056, %v930
      %v1058 = vand.u32 2147483647, %v930
      %vm1059 = vcmp.lt.f32.partialorder %v1058, 0.0004427343
      %v1060 = vsel %vm1059, %v1057, %v1054
      %v1061 = vadd.f32 %v932, 1.0
      %v1062 = vlog2.pop %v1061
      %v1063 = vmul.f32 %v1062, 0.6931472
      %v1064 = vmul.f32 -0.5, %v932
      %v1065 = vadd.f32 %v1064, 1.0
      %v1066 = vmul.f32 %v1065, %v932
      %v1067 = vand.u32 2147483647, %v932
      %vm1068 = vcmp.lt.f32.partialorder %v1067, 0.0004427343
      %v1069 = vsel %vm1068, %v1066, %v1063
      %v1070 = vadd.f32 %v934, 1.0
      %v1071 = vlog2.pop %v1070
      %v1072 = vmul.f32 %v1071, 0.6931472
      %v1073 = vmul.f32 -0.5, %v934
      %v1074 = vadd.f32 %v1073, 1.0
      %v1075 = vmul.f32 %v1074, %v934
      %v1076 = vand.u32 2147483647, %v934
      %vm1077 = vcmp.lt.f32.partialorder %v1076, 0.0004427343
      %v1078 = vsel %vm1077, %v1075, %v1072
      %v1079 = vadd.f32 %v855, %v943
      %v1080 = vadd.f32 %v856, %v952
      %v1081 = vadd.f32 %v857, %v961
      %v1082 = vadd.f32 %v858, %v970
      %v1083 = vadd.f32 %v859, %v979
      %v1084 = vadd.f32 %v860, %v988
      %v1085 = vadd.f32 %v861, %v997
      %v1086 = vadd.f32 %v862, %v1006
      %v1087 = vadd.f32 %v863, %v1015
      %v1088 = vadd.f32 %v864, %v1024
      %v1089 = vadd.f32 %v865, %v1033
      %v1090 = vadd.f32 %v866, %v1042
      %v1091 = vadd.f32 %v867, %v1051
      %v1092 = vadd.f32 %v868, %v1060
      %v1093 = vadd.f32 %v869, %v1069
      %v1094 = vadd.f32 %v870, %v1078
      %v1095 = vsel %vm737, %v1079, 0.0
      %v1096 = vsel %vm737, %v1080, 0.0
      %v1097 = vadd.f32 %v1095, %v1096
      %v1098 = vrot.slane %v1097, 4
      %v1099 = vadd.f32 %v1097, %v1098
      %v1100 = vrot.slane %v1099, 2
      %v1101 = vadd.f32 %v1099, %v1100
      %v1102 = vrot.slane %v1101, 1
      %v1103 = vadd.f32 %v1101, %v1102
      %v1104 = vsel %vm737, %v1081, 0.0
      %v1105 = vsel %vm737, %v1082, 0.0
      %v1106 = vadd.f32 %v1104, %v1105
      %v1107 = vrot.slane %v1106, 4
      %v1108 = vadd.f32 %v1106, %v1107
      %v1109 = vrot.slane %v1108, 2
      %v1110 = vadd.f32 %v1108, %v1109
      %v1111 = vrot.slane %v1110, 1
      %v1112 = vadd.f32 %v1110, %v1111
      %v1113 = vsel %vm737, %v1083, 0.0
      %v1114 = vsel %vm737, %v1084, 0.0
      %v1115 = vadd.f32 %v1113, %v1114
      %v1116 = vrot.slane %v1115, 4
      %v1117 = vadd.f32 %v1115, %v1116
      %v1118 = vrot.slane %v1117, 2
      %v1119 = vadd.f32 %v1117, %v1118
      %v1120 = vrot.slane %v1119, 1
      %v1121 = vadd.f32 %v1119, %v1120
      %v1122 = vsel %vm737, %v1085, 0.0
      %v1123 = vsel %vm737, %v1086, 0.0
      %v1124 = vadd.f32 %v1122, %v1123
      %v1125 = vrot.slane %v1124, 4
      %v1126 = vadd.f32 %v1124, %v1125
      %v1127 = vrot.slane %v1126, 2
      %v1128 = vadd.f32 %v1126, %v1127
      %v1129 = vrot.slane %v1128, 1
      %v1130 = vadd.f32 %v1128, %v1129
      %v1131 = vsel %vm737, %v1087, 0.0
      %v1132 = vsel %vm737, %v1088, 0.0
      %v1133 = vadd.f32 %v1131, %v1132
      %v1134 = vrot.slane %v1133, 4
      %v1135 = vadd.f32 %v1133, %v1134
      %v1136 = vrot.slane %v1135, 2
      %v1137 = vadd.f32 %v1135, %v1136
      %v1138 = vrot.slane %v1137, 1
      %v1139 = vadd.f32 %v1137, %v1138
      %v1140 = vsel %vm737, %v1089, 0.0
      %v1141 = vsel %vm737, %v1090, 0.0
      %v1142 = vadd.f32 %v1140, %v1141
      %v1143 = vrot.slane %v1142, 4
      %v1144 = vadd.f32 %v1142, %v1143
      %v1145 = vrot.slane %v1144, 2
      %v1146 = vadd.f32 %v1144, %v1145
      %v1147 = vrot.slane %v1146, 1
      %v1148 = vadd.f32 %v1146, %v1147
      %v1149 = vsel %vm737, %v1091, 0.0
      %v1150 = vsel %vm737, %v1092, 0.0
      %v1151 = vadd.f32 %v1149, %v1150
      %v1152 = vrot.slane %v1151, 4
      %v1153 = vadd.f32 %v1151, %v1152
      %v1154 = vrot.slane %v1153, 2
      %v1155 = vadd.f32 %v1153, %v1154
      %v1156 = vrot.slane %v1155, 1
      %v1157 = vadd.f32 %v1155, %v1156
      %v1158 = vsel %vm737, %v1093, 0.0
      %v1159 = vsel %vm737, %v1094, 0.0
      %v1160 = vadd.f32 %v1158, %v1159
      %v1161 = vrot.slane %v1160, 4
      %v1162 = vadd.f32 %v1160, %v1161
      %v1163 = vrot.slane %v1162, 2
      %v1164 = vadd.f32 %v1162, %v1163
      %v1165 = vrot.slane %v1164, 1
      %v1166 = vadd.f32 %v1164, %v1165
      %v1167 = vmul.f32 %v1103, 0.0625
      %v1168 = vmul.f32 %v1112, 0.0625
      %v1169 = vmul.f32 %v1121, 0.0625
      %v1170 = vmul.f32 %v1130, 0.0625
      %v1171 = vmul.f32 %v1139, 0.0625
      %v1172 = vmul.f32 %v1148, 0.0625
      %v1173 = vmul.f32 %v1157, 0.0625
      %v1174 = vmul.f32 %v1166, 0.0625
      %v1175 = vld [vmem:[%s5] sm:$0xff]
      %v1176 = vld [vmem:[%s5 + $0x8] sm:$0xff]
      %v1177 = vld [vmem:[%s5 + $0x10] sm:$0xff]
      %v1178 = vld [vmem:[%s5 + $0x18] sm:$0xff]
      %v1179 = vld [vmem:[%s5 + $0x20] sm:$0xff]
      %v1180 = vld [vmem:[%s5 + $0x28] sm:$0xff]
      %v1181 = vld [vmem:[%s5 + $0x30] sm:$0x3]
      %v1182 = vld [vmem:[%s6] sm:$0x1]
      %v1184 = vperm.slane %v1182, 0
      %vm1194 = vcmask 1041409
      %v1195 = vsel %vm1194, %v1168, %v1167
      %vm1196 = vcmask 1042434
      %v1197 = vsel %vm1196, %v1169, %v1195
      %vm1198 = vcmask 1043459
      %v1199 = vsel %vm1198, %v1170, %v1197
      %vm1200 = vcmask 1044484
      %v1201 = vsel %vm1200, %v1171, %v1199
      %vm1202 = vcmask 1045509
      %v1203 = vsel %vm1202, %v1172, %v1201
      %vm1204 = vcmask 1046534
      %v1205 = vsel %vm1204, %v1173, %v1203
      %vm1206 = vcmask 1047559
      %v1207 = vsel %vm1206, %v1174, %v1205
      %v1208 = vsel %vm737, %v1207, 0
      %v1211 = vsel %vm786, %v1181, 0
      %1213 = vmatpush.msra.mxu0 0.0
      %1214 = vmatpush.msra.mxu0 0.0
      %1215 = vmatpush.msra.mxu0 0.0
      %1216 = vmatpush.msra.mxu0 0.0
      %1217 = vmatpush.msra.mxu0 0.0
      %1218 = vmatpush.msra.mxu0 0.0
      %1219 = vmatpush.msra.mxu0 0.0
      %1220 = vmatpush.msra.mxu0 0.0
      %1221 = vmatpush.msra.mxu0 0.0
      %1222 = vmatpush.msra.mxu0 %v1211
      %1223 = vmatpush.msra.mxu0 %v1180
      %1224 = vmatpush.msra.mxu0 %v1179
      %1225 = vmatpush.msra.mxu0 %v1178
      %1226 = vmatpush.msra.mxu0 %v1177
      %1227 = vmatpush.msra.mxu0 %v1176
      %1228 = vmatpush.msra.mxu0 %v1175
      %1229 = vmatmul.f32.gmra.mxu0 %v1208
      %v1230 = vpop.f32.mrf.mxu0
      %v1231 = vadd.f32 %v1184, %v1230
      %1232 = vdwg.mxu0
      %1233 = vxpose.xlu0.b32.start [1/16] %v1231, 128
      %1234 = vxpose.xlu0.b32.cont [2/16] 0.0, 128
      %1235 = vxpose.xlu0.b32.cont [3/16] 0.0, 128
      %1236 = vxpose.xlu0.b32.cont [4/16] 0.0, 128
      %1237 = vxpose.xlu0.b32.cont [5/16] 0.0, 128
      %1238 = vxpose.xlu0.b32.cont [6/16] 0.0, 128
      %1239 = vxpose.xlu0.b32.cont [7/16] 0.0, 128
      %1240 = vxpose.xlu0.b32.cont [8/16] 0.0, 128
      %1241 = vxpose.xlu0.b32.cont [9/16] 0.0, 128
      %1242 = vxpose.xlu0.b32.cont [10/16] 0.0, 128
      %1243 = vxpose.xlu0.b32.cont [11/16] 0.0, 128
      %1244 = vxpose.xlu0.b32.cont [12/16] 0.0, 128
      %1245 = vxpose.xlu0.b32.cont [13/16] 0.0, 128
      %1246 = vxpose.xlu0.b32.cont [14/16] 0.0, 128
      %1247 = vxpose.xlu0.b32.cont [15/16] 0.0, 128
      %1248 = vxpose.xlu0.b32.end [16/16] 0.0, 128
      %v1249 = vpop.trf.xlu0
      %v1250 = vpop.trf.xlu0
      %v1251 = vpop.trf.xlu0
      %v1252 = vpop.trf.xlu0
      %v1253 = vpop.trf.xlu0
      %v1254 = vpop.trf.xlu0
      %v1255 = vpop.trf.xlu0
      %v1256 = vpop.trf.xlu0
      %v1257 = vpop.trf.xlu0
      %v1258 = vpop.trf.xlu0
      %v1259 = vpop.trf.xlu0
      %v1260 = vpop.trf.xlu0
      %v1261 = vpop.trf.xlu0
      %v1262 = vpop.trf.xlu0
      %v1263 = vpop.trf.xlu0
      %v1264 = vpop.trf.xlu0
      %v1265 = vmul.f32 %v1250, 0.5
      %v1266 = vmul.f32 %v1265, 1.442695
      %v1267 = vpow.pop %v1266
      %v1268 = vmul.f32 %v1267, %v1267
      %v1269 = vld [vmem:[%s344] sm:$0xff]
      %v1270 = vmul.f32 %v1267, %v1269
      %v1271 = vadd.f32 %v1249, %v1270
      %vm1272 = vcmask 64512
      %1273 = vst.msk [vmem:[%s349] sm:$0xff] %vm1272, %v1271
      %v1274 = vld [vmem:[%s8] sm:$0xff]
      %1276 = vset.pattern.permute.xlu0 0
      %1277 = vperm.xlu0 %1276, %v1274
      %v1278 = vpop.permute.xlu0 %1277
      %v1280 = vadd.f32 %v1271, %v1278
      %s1281 = scalar_lea.vmem %s349, 8
      %1282 = vst.msk [vmem:[%s1281] sm:$0xff] %vm1272, %v1280
      %v1283 = vmul.f32 %v1249, %v1249
      %v1284 = vadd.f32 %v1268, %v1283
      %v1285 = vsub.f32 %v1284, 1.0
      %v1286 = vsub.f32 %v1285, %v1250
      %v1287 = vmul.f32 %v1286, 0.5
      %s1288 = scalar_lea.vmem %s349, 16
      %1289 = vst.msk [vmem:[%s1288] sm:$0xff] %vm1272, %v1287
      %p1290 = scmp.lt.s32.totalorder %s20, 1
      %s1291 = scalar_select %p1290, %s20, 1
      %s1292 = smul.addr %s1291, 3
      %s1293 = smul.addr %s1292, 8
      %s1294 = scalar_lea.vmem %s9, %s1293
      // Predicated region
      $region57: #{latent_mixture_forward.1} parent=55 // pred_check
        %p1295 = pneg %p237
      $region58: #{latent_mixture_forward.1} parent=55 // pred_check_branch
        %1297 = sbr.rel (%p1295) target = $region60
      $region59: #{latent_mixture_forward.1} parent=55 // pred_region
        _
      $region60: #{latent_mixture_forward.1} parent=55 // pred_fallthru
        _
    $region56: #{latent_mixture_forward.1} parent=5 // pred_fallthru
      _
    %p1298 = scmp.le.s32.totalorder 2, %s15
    // Predicated region
    $region61: #{latent_mixture_forward.1} parent=5 // pred_check
      %p1299 = pneg %p1298
    $region62: #{latent_mixture_forward.1} parent=5 // pred_check_branch
      %1301 = sbr.rel (%p1299) target = $region64
    $region63: #{latent_mixture_forward.1} parent=5 // pred_region
      %s1302 = ssub.s32 %s15, 2
      // Predicated region
      $region65: #{latent_mixture_forward.1} parent=63 // pred_check
        %p1303 = pneg %p243
      $region66: #{latent_mixture_forward.1} parent=63 // pred_check_branch
        %1305 = sbr.rel (%p1303) target = $region68
      $region67: #{latent_mixture_forward.1} parent=63 // pred_region
        %p1306 = scmp.lt.s32.totalorder %s21, 1
        %s1307 = scalar_select %p1306, %s21, 1
        %s1308 = smul.addr %s1307, 3
        %s1309 = smul.addr %s1308, 8
        %s1310 = scalar_lea.vmem %s9, %s1309
      $region68: #{latent_mixture_forward.1} parent=63 // pred_fallthru
        _
    $region64: #{latent_mixture_forward.1} parent=5 // pred_fallthru
      _
  $region6: #{latent_mixture_forward.1} parent=0 // loop_footer
    %s19 = sadd.s32 1, %s15
  $region7: #{latent_mixture_forward.1} parent=0 // loop_footer_branch
    %14 = sbr.rel target = $region3
  $region8: #{latent_mixture_forward.1} parent=0 // loop_exit
    _

</llo_original>
